<compile_context>
chip_gen: v5e
topology: v5e:2x2
jax: 0.10.0
libtpu: 0.0.40
codegen_flags: <defaults>
</compile_context>

<pallas_src>
import math

import jax
import jax.numpy as jnp
from jax.experimental import pallas as pl
from jax.experimental.pallas import tpu as pltpu


_HIDDEN = 512
_LANE = 128


def _round_up(x, m):
    return ((x + m - 1) // m) * m


def _leaky_relu(x, negative_slope=0.01):
    # Matches torch.nn.LeakyReLU default (negative_slope=0.01).
    return jnp.where(x > 0, x, negative_slope * x)


# --------------------------------------------------------------------------
# Kernel: one batch tile of
#   Linear(d_in,512) -> LeakyReLU -> Linear(512,512) -> LeakyReLU
#   -> Linear(512, dim_z_padded)
# --------------------------------------------------------------------------
def driftnet_kernel(t_ref, z_ref, f_ref,
                    w1z_ref, w1f_ref, w1c_ref, w1s_ref, b1_ref,
                    w2_ref, b2_ref, w3_ref, b3_ref,
                    out_ref):
    # Trig features built in-kernel (no HBM round-trip for h).
    two_pi_t = (2.0 * math.pi) * t_ref[...]                 # (TB, 1) f32
    c = jnp.cos(two_pi_t)
    s = jnp.sin(two_pi_t)

    # Layer 1: split matmul (z, f parts on the MXU, trig rank-1 parts on VPU).
    a1 = jnp.dot(z_ref[...].astype(jnp.bfloat16), w1z_ref[...],
                 preferred_element_type=jnp.float32)
    a1 = a1 + jnp.dot(f_ref[...].astype(jnp.bfloat16), w1f_ref[...],
                      preferred_element_type=jnp.float32)
    a1 = a1 + c * w1c_ref[...] + s * w1s_ref[...] + b1_ref[...]
    a1 = _leaky_relu(a1)                                    # f32 elementwise

    # Layer 2.
    a2 = jnp.dot(a1.astype(jnp.bfloat16), w2_ref[...],
                 preferred_element_type=jnp.float32) + b2_ref[...]
    a2 = _leaky_relu(a2)

    # Layer 3 (lane-padded output slab).
    a3 = jnp.dot(a2.astype(jnp.bfloat16), w3_ref[...],
                 preferred_element_type=jnp.float32) + b3_ref[...]
    out_ref[...] = a3.astype(out_ref.dtype)


# --------------------------------------------------------------------------
# Parameter preparation: split W1, cast matmul weights to bf16, pad the
# output projection to a lane-dense 128-wide slab (padded columns are zero).
# --------------------------------------------------------------------------
def prepare_params(params, dim_z, dim_f):
    w1, b1, w2, b2, w3, b3 = params
    out_pad = _round_up(dim_z, _LANE)

    w1z = w1[:dim_z].astype(jnp.bfloat16)                         # (dz, 512)
    w1f = w1[dim_z:dim_z + dim_f].astype(jnp.bfloat16)            # (df, 512)
    w1c = w1[dim_z + dim_f:dim_z + dim_f + 1].astype(jnp.float32)  # (1, 512)
    w1s = w1[dim_z + dim_f + 1:dim_z + dim_f + 2].astype(jnp.float32)

    w3p = jnp.zeros((w3.shape[0], out_pad), jnp.float32)
    w3p = w3p.at[:, :dim_z].set(w3).astype(jnp.bfloat16)
    b3p = jnp.zeros((1, out_pad), jnp.float32).at[:, :dim_z].set(
        b3.reshape(1, -1))

    return (w1z, w1f, w1c, w1s,
            b1.reshape(1, -1).astype(jnp.float32),
            w2.astype(jnp.bfloat16),
            b2.reshape(1, -1).astype(jnp.float32),
            w3p, b3p)


# --------------------------------------------------------------------------
# Forward pass wrapper.
# --------------------------------------------------------------------------
def driftnet_forward(mu, t, z, f, prepared, dim_z):
    """mu: unused (signature parity with the PyTorch module).
    t: (B, 1), z: (B, dim_z), f: (B, dim_f); all float32."""
    del mu
    (w1z, w1f, w1c, w1s, b1, w2, b2, w3p, b3p) = prepared

    B = z.shape[0]
    dim_f = f.shape[1]
    hidden = w2.shape[0]
    out_pad = w3p.shape[1]

    # Batch tiling: 256-row tiles (matches v6e/v7x 256-wide MXU); for small B
    # just round up to a sublane multiple.
    tile_b = 256 if B >= 256 else _round_up(B, 8)
    b_pad = _round_up(B, tile_b)
    if b_pad != B:
        pad = ((0, b_pad - B), (0, 0))
        t = jnp.pad(t, pad)
        z = jnp.pad(z, pad)
        f = jnp.pad(f, pad)

    grid = (b_pad // tile_b,)

    batch_spec = lambda n: pl.BlockSpec((tile_b, n), lambda i: (i, 0))
    resident = lambda shp: pl.BlockSpec(shp, lambda i: (0, 0))

    in_arrays = (t, z, f, w1z, w1f, w1c, w1s, b1, w2, b2, w3p, b3p)
    flops = 2 * b_pad * (dim_z * hidden + dim_f * hidden
                         + hidden * hidden + hidden * out_pad)
    bytes_accessed = (sum(int(a.size) * a.dtype.itemsize for a in in_arrays)
                      + b_pad * out_pad * 4)

    out = pl.pallas_call(
        driftnet_kernel,
        out_shape=jax.ShapeDtypeStruct((b_pad, out_pad), jnp.float32),
        grid=grid,
        in_specs=[
            batch_spec(1), batch_spec(dim_z), batch_spec(dim_f),
            resident(w1z.shape), resident(w1f.shape),
            resident(w1c.shape), resident(w1s.shape), resident(b1.shape),
            resident(w2.shape), resident(b2.shape),
            resident(w3p.shape), resident(b3p.shape),
        ],
        out_specs=batch_spec(out_pad),
        compiler_params=pltpu.CompilerParams(
            dimension_semantics=("parallel",)),
        cost_estimate=pl.CostEstimate(
            flops=flops,
            transcendentals=2 * b_pad,
            bytes_accessed=bytes_accessed),
    )(t, z, f, w1z, w1f, w1c, w1s, b1, w2, b2, w3p, b3p)

    return out[:B, :dim_z]


# --------------------------------------------------------------------------
# Deterministic parameter init (mimics torch.nn.Linear defaults:
# U(-1/sqrt(fan_in), 1/sqrt(fan_in))). Weights stored as (in, out) so the
# kernel computes y = x @ W + b (equivalent to PyTorch's x @ W.T + b).
# --------------------------------------------------------------------------
def init_params(key, dim_z, dim_f, hidden=_HIDDEN):
    d_in = dim_z + dim_f + 2
    shapes = [(d_in, hidden), (hidden,), (hidden, hidden), (hidden,),
              (hidden, dim_z), (dim_z,)]
    fan_ins = [d_in, d_in, hidden, hidden, hidden, hidden]
    keys = jax.random.split(key, len(shapes))
    params = []
    for k, shp, fan_in in zip(keys, shapes, fan_ins):
        bound = 1.0 / math.sqrt(fan_in)
        params.append(jax.random.uniform(k, shp, jnp.float32, -bound, bound))
    return tuple(params)


if __name__ == "__main__":
    B = 8
    dim_z = 32
    dim_f = 30   # -> MLP input dim = dim_z + dim_f + 2 = 64

    key = jax.random.PRNGKey(0)
    k_mu, k_t, k_z, k_f, k_p = jax.random.split(key, 5)

    mu = jax.random.normal(k_mu, (B, dim_z), jnp.float32)  # unused by forward
    t = jax.random.uniform(k_t, (B, 1), jnp.float32)
    z = jax.random.normal(k_z, (B, dim_z), jnp.float32)
    f = jax.random.normal(k_f, (B, dim_f), jnp.float32)

    params = init_params(k_p, dim_z, dim_f)
    prepared = prepare_params(params, dim_z, dim_f)

    dz = driftnet_forward(mu, t, z, f, prepared, dim_z)
    dz = jax.block_until_ready(dz)

    # Pure-JAX f32 reference of the same forward semantics.
    w1, b1, w2, b2, w3, b3 = params
    h = jnp.concatenate(
        [z, f, jnp.cos(2 * math.pi * t), jnp.sin(2 * math.pi * t)], axis=-1)
    a = h @ w1 + b1
    a = jnp.where(a > 0, a, 0.01 * a)
    a = a @ w2 + b2
    a = jnp.where(a > 0, a, 0.01 * a)
    ref = a @ w3 + b3

    assert dz.shape == (B, dim_z)
    # bf16 matmul inputs (f32 accumulation) -> loosen tolerance vs f32 ref.
    assert jnp.allclose(dz, ref, atol=5e-2, rtol=5e-2), float(
        jnp.max(jnp.abs(dz - ref)))

    print("KERNEL_OK")
</pallas_src>

<mosaic_0001>
module attributes {stable_mosaic.version = 11 : i64} {
  func.func @driftnet_kernel(%arg0: i32, %arg1: memref<8x1xf32, #tpu.memory_space<vmem>>, %arg2: memref<8x32xf32, #tpu.memory_space<vmem>>, %arg3: memref<8x30xf32, #tpu.memory_space<vmem>>, %arg4: memref<32x512xbf16, #tpu.memory_space<vmem>>, %arg5: memref<30x512xbf16, #tpu.memory_space<vmem>>, %arg6: memref<1x512xf32, #tpu.memory_space<vmem>>, %arg7: memref<1x512xf32, #tpu.memory_space<vmem>>, %arg8: memref<1x512xf32, #tpu.memory_space<vmem>>, %arg9: memref<512x512xbf16, #tpu.memory_space<vmem>>, %arg10: memref<1x512xf32, #tpu.memory_space<vmem>>, %arg11: memref<512x128xbf16, #tpu.memory_space<vmem>>, %arg12: memref<1x128xf32, #tpu.memory_space<vmem>>, %arg13: memref<8x128xf32, #tpu.memory_space<vmem>>) attributes {dimension_semantics = [#tpu.dimension_semantics<parallel>], iteration_bounds = array<i64: 1>, scalar_prefetch = 0 : i64, scratch_operands = 0 : i64, tpu.core_type = #tpu.core_type<tc>, window_params = [{transform_indices = @transform_0, window_bounds = array<i64: 8, 1>}, {transform_indices = @transform_1, window_bounds = array<i64: 8, 32>}, {transform_indices = @transform_2, window_bounds = array<i64: 8, 30>}, {pipeline_mode = #tpu.pipeline_mode<synchronous>, transform_indices = @transform_3, window_bounds = array<i64: 32, 512>}, {pipeline_mode = #tpu.pipeline_mode<synchronous>, transform_indices = @transform_4, window_bounds = array<i64: 30, 512>}, {pipeline_mode = #tpu.pipeline_mode<synchronous>, transform_indices = @transform_5, window_bounds = array<i64: 1, 512>}, {pipeline_mode = #tpu.pipeline_mode<synchronous>, transform_indices = @transform_6, window_bounds = array<i64: 1, 512>}, {pipeline_mode = #tpu.pipeline_mode<synchronous>, transform_indices = @transform_7, window_bounds = array<i64: 1, 512>}, {pipeline_mode = #tpu.pipeline_mode<synchronous>, transform_indices = @transform_8, window_bounds = array<i64: 512, 512>}, {pipeline_mode = #tpu.pipeline_mode<synchronous>, transform_indices = @transform_9, window_bounds = array<i64: 1, 512>}, {pipeline_mode = #tpu.pipeline_mode<synchronous>, transform_indices = @transform_10, window_bounds = array<i64: 512, 128>}, {pipeline_mode = #tpu.pipeline_mode<synchronous>, transform_indices = @transform_11, window_bounds = array<i64: 1, 128>}, {transform_indices = @transform_12, window_bounds = array<i64: 8, 128>}]} {
    %c0 = arith.constant 0 : index
    %c0_0 = arith.constant 0 : index
    %0 = vector.load %arg1[%c0, %c0_0] : memref<8x1xf32, #tpu.memory_space<vmem>>, vector<8x1xf32>
    %cst = arith.constant 6.28318548 : f32
    %1 = vector.broadcast %cst : f32 to vector<8x1xf32>
    %2 = arith.mulf %1, %0 : vector<8x1xf32>
    %3 = math.cos %2 : vector<8x1xf32>
    %4 = math.sin %2 : vector<8x1xf32>
    %c0_1 = arith.constant 0 : index
    %c0_2 = arith.constant 0 : index
    %5 = vector.load %arg2[%c0_1, %c0_2] : memref<8x32xf32, #tpu.memory_space<vmem>>, vector<8x32xf32>
    %6 = arith.truncf %5 : vector<8x32xf32> to vector<8x32xbf16>
    %c0_3 = arith.constant 0 : index
    %c0_4 = arith.constant 0 : index
    %7 = vector.load %arg4[%c0_3, %c0_4] : memref<32x512xbf16, #tpu.memory_space<vmem>>, vector<32x512xbf16>
    %cst_5 = arith.constant dense<0.000000e+00> : vector<8x512xf32>
    %8 = tpu.matmul %6, %7, %cst_5 {dimension_numbers = #tpu.dot_dimension_numbers<[1], [0], [0], [1], [0, 0, 1, 1], [], []>} : vector<8x32xbf16>, vector<32x512xbf16>, vector<8x512xf32> -> vector<8x512xf32>
    %c0_6 = arith.constant 0 : index
    %c0_7 = arith.constant 0 : index
    %9 = vector.load %arg3[%c0_6, %c0_7] : memref<8x30xf32, #tpu.memory_space<vmem>>, vector<8x30xf32>
    %10 = arith.truncf %9 : vector<8x30xf32> to vector<8x30xbf16>
    %c0_8 = arith.constant 0 : index
    %c0_9 = arith.constant 0 : index
    %11 = vector.load %arg5[%c0_8, %c0_9] : memref<30x512xbf16, #tpu.memory_space<vmem>>, vector<30x512xbf16>
    %cst_10 = arith.constant dense<0.000000e+00> : vector<8x512xf32>
    %12 = tpu.matmul %10, %11, %cst_10 {dimension_numbers = #tpu.dot_dimension_numbers<[1], [0], [0], [1], [0, 0, 1, 1], [], []>} : vector<8x30xbf16>, vector<30x512xbf16>, vector<8x512xf32> -> vector<8x512xf32>
    %13 = arith.addf %8, %12 : vector<8x512xf32>
    %c0_11 = arith.constant 0 : index
    %c0_12 = arith.constant 0 : index
    %14 = vector.load %arg6[%c0_11, %c0_12] : memref<1x512xf32, #tpu.memory_space<vmem>>, vector<1x512xf32>
    %15 = vector.broadcast %3 : vector<8x1xf32> to vector<8x512xf32>
    %16 = vector.broadcast %14 : vector<1x512xf32> to vector<8x512xf32>
    %17 = arith.mulf %15, %16 : vector<8x512xf32>
    %18 = arith.addf %13, %17 : vector<8x512xf32>
    %c0_13 = arith.constant 0 : index
    %c0_14 = arith.constant 0 : index
    %19 = vector.load %arg7[%c0_13, %c0_14] : memref<1x512xf32, #tpu.memory_space<vmem>>, vector<1x512xf32>
    %20 = vector.broadcast %4 : vector<8x1xf32> to vector<8x512xf32>
    %21 = vector.broadcast %19 : vector<1x512xf32> to vector<8x512xf32>
    %22 = arith.mulf %20, %21 : vector<8x512xf32>
    %23 = arith.addf %18, %22 : vector<8x512xf32>
    %c0_15 = arith.constant 0 : index
    %c0_16 = arith.constant 0 : index
    %24 = vector.load %arg8[%c0_15, %c0_16] : memref<1x512xf32, #tpu.memory_space<vmem>>, vector<1x512xf32>
    %25 = vector.broadcast %24 : vector<1x512xf32> to vector<8x512xf32>
    %26 = arith.addf %23, %25 : vector<8x512xf32>
    %cst_17 = arith.constant 0.000000e+00 : f32
    %27 = vector.broadcast %cst_17 : f32 to vector<8x512xf32>
    %28 = arith.cmpf ogt, %26, %27 : vector<8x512xf32>
    %cst_18 = arith.constant 0.00999999977 : f32
    %29 = vector.broadcast %cst_18 : f32 to vector<8x512xf32>
    %30 = arith.mulf %29, %26 : vector<8x512xf32>
    %31 = arith.select %28, %26, %30 : vector<8x512xi1>, vector<8x512xf32>
    %32 = arith.truncf %31 : vector<8x512xf32> to vector<8x512xbf16>
    %c0_19 = arith.constant 0 : index
    %c0_20 = arith.constant 0 : index
    %33 = vector.load %arg9[%c0_19, %c0_20] : memref<512x512xbf16, #tpu.memory_space<vmem>>, vector<512x512xbf16>
    %cst_21 = arith.constant dense<0.000000e+00> : vector<8x512xf32>
    %34 = tpu.matmul %32, %33, %cst_21 {dimension_numbers = #tpu.dot_dimension_numbers<[1], [0], [0], [1], [0, 0, 1, 1], [], []>} : vector<8x512xbf16>, vector<512x512xbf16>, vector<8x512xf32> -> vector<8x512xf32>
    %c0_22 = arith.constant 0 : index
    %c0_23 = arith.constant 0 : index
    %35 = vector.load %arg10[%c0_22, %c0_23] : memref<1x512xf32, #tpu.memory_space<vmem>>, vector<1x512xf32>
    %36 = vector.broadcast %35 : vector<1x512xf32> to vector<8x512xf32>
    %37 = arith.addf %34, %36 : vector<8x512xf32>
    %cst_24 = arith.constant 0.000000e+00 : f32
    %38 = vector.broadcast %cst_24 : f32 to vector<8x512xf32>
    %39 = arith.cmpf ogt, %37, %38 : vector<8x512xf32>
    %cst_25 = arith.constant 0.00999999977 : f32
    %40 = vector.broadcast %cst_25 : f32 to vector<8x512xf32>
    %41 = arith.mulf %40, %37 : vector<8x512xf32>
    %42 = arith.select %39, %37, %41 : vector<8x512xi1>, vector<8x512xf32>
    %43 = arith.truncf %42 : vector<8x512xf32> to vector<8x512xbf16>
    %c0_26 = arith.constant 0 : index
    %c0_27 = arith.constant 0 : index
    %44 = vector.load %arg11[%c0_26, %c0_27] : memref<512x128xbf16, #tpu.memory_space<vmem>>, vector<512x128xbf16>
    %cst_28 = arith.constant dense<0.000000e+00> : vector<8x128xf32>
    %45 = tpu.matmul %43, %44, %cst_28 {dimension_numbers = #tpu.dot_dimension_numbers<[1], [0], [0], [1], [0, 0, 1, 1], [], []>} : vector<8x512xbf16>, vector<512x128xbf16>, vector<8x128xf32> -> vector<8x128xf32>
    %c0_29 = arith.constant 0 : index
    %c0_30 = arith.constant 0 : index
    %46 = vector.load %arg12[%c0_29, %c0_30] : memref<1x128xf32, #tpu.memory_space<vmem>>, vector<1x128xf32>
    %47 = vector.broadcast %46 : vector<1x128xf32> to vector<8x128xf32>
    %48 = arith.addf %45, %47 : vector<8x128xf32>
    %c0_31 = arith.constant 0 : index
    %c0_32 = arith.constant 0 : index
    %49 = vector.load %arg13[%c0_31, %c0_32] : memref<8x128xf32, #tpu.memory_space<vmem>>, vector<8x128xf32>
    tpu.vector_store %arg13[%c0_31, %c0_32], %48 {strides = array<i32>} : memref<8x128xf32, #tpu.memory_space<vmem>>, vector<8x128xf32>,
    return
  }
  func.func @transform_0(%arg0: i32) -> (i32, i32) {
    %c0_i32 = arith.constant 0 : i32
    %c0_i32_0 = arith.constant 0 : i32
    return %arg0, %c0_i32 : i32, i32
  }
  func.func @transform_1(%arg0: i32) -> (i32, i32) {
    %c0_i32 = arith.constant 0 : i32
    %c0_i32_0 = arith.constant 0 : i32
    return %arg0, %c0_i32 : i32, i32
  }
  func.func @transform_2(%arg0: i32) -> (i32, i32) {
    %c0_i32 = arith.constant 0 : i32
    %c0_i32_0 = arith.constant 0 : i32
    return %arg0, %c0_i32 : i32, i32
  }
  func.func @transform_3(%arg0: i32) -> (i32, i32) {
    %c0_i32 = arith.constant 0 : i32
    %c0_i32_0 = arith.constant 0 : i32
    %c0_i32_1 = arith.constant 0 : i32
    return %c0_i32, %c0_i32_0 : i32, i32
  }
  func.func @transform_4(%arg0: i32) -> (i32, i32) {
    %c0_i32 = arith.constant 0 : i32
    %c0_i32_0 = arith.constant 0 : i32
    %c0_i32_1 = arith.constant 0 : i32
    return %c0_i32, %c0_i32_0 : i32, i32
  }
  func.func @transform_5(%arg0: i32) -> (i32, i32) {
    %c0_i32 = arith.constant 0 : i32
    %c0_i32_0 = arith.constant 0 : i32
    %c0_i32_1 = arith.constant 0 : i32
    return %c0_i32, %c0_i32_0 : i32, i32
  }
  func.func @transform_6(%arg0: i32) -> (i32, i32) {
    %c0_i32 = arith.constant 0 : i32
    %c0_i32_0 = arith.constant 0 : i32
    %c0_i32_1 = arith.constant 0 : i32
    return %c0_i32, %c0_i32_0 : i32, i32
  }
  func.func @transform_7(%arg0: i32) -> (i32, i32) {
    %c0_i32 = arith.constant 0 : i32
    %c0_i32_0 = arith.constant 0 : i32
    %c0_i32_1 = arith.constant 0 : i32
    return %c0_i32, %c0_i32_0 : i32, i32
  }
  func.func @transform_8(%arg0: i32) -> (i32, i32) {
    %c0_i32 = arith.constant 0 : i32
    %c0_i32_0 = arith.constant 0 : i32
    %c0_i32_1 = arith.constant 0 : i32
    return %c0_i32, %c0_i32_0 : i32, i32
  }
  func.func @transform_9(%arg0: i32) -> (i32, i32) {
    %c0_i32 = arith.constant 0 : i32
    %c0_i32_0 = arith.constant 0 : i32
    %c0_i32_1 = arith.constant 0 : i32
    return %c0_i32, %c0_i32_0 : i32, i32
  }
  func.func @transform_10(%arg0: i32) -> (i32, i32) {
    %c0_i32 = arith.constant 0 : i32
    %c0_i32_0 = arith.constant 0 : i32
    %c0_i32_1 = arith.constant 0 : i32
    return %c0_i32, %c0_i32_0 : i32, i32
  }
  func.func @transform_11(%arg0: i32) -> (i32, i32) {
    %c0_i32 = arith.constant 0 : i32
    %c0_i32_0 = arith.constant 0 : i32
    %c0_i32_1 = arith.constant 0 : i32
    return %c0_i32, %c0_i32_0 : i32, i32
  }
  func.func @transform_12(%arg0: i32) -> (i32, i32) {
    %c0_i32 = arith.constant 0 : i32
    %c0_i32_0 = arith.constant 0 : i32
    return %arg0, %c0_i32 : i32, i32
  }
}

</mosaic_0001>

<llo_original>
// kernel: tpu_custom_call.1
$region0: #{tpu_custom_call.1}
  #allocation0 [shape = 'u32[]', space=smem, size = 0x4, offset = 0x4, fixed_abs, tag = 'smem constant byte address 0x4 - core index']
  #allocation1 [shape = 'u32[72,128]{1,0:T(1,128)}', space=vmem, size = 0x9000, scoped, tag = 'internal scratch']
  %s0 = inlined_call_operand.vmem [shape: f32[8,1], index: 0, kind: input, shape index: {}]
  %s1 = inlined_call_operand.vmem [shape: f32[8,32], index: 1, kind: input, shape index: {}]
  %s2 = inlined_call_operand.hbm [shape: f32[8,30], index: 2, kind: input, shape index: {}]
  %s3 = inlined_call_operand.hbm [shape: bf16[32,512], index: 3, kind: input, shape index: {}]
  %s4 = inlined_call_operand.hbm [shape: bf16[30,512], index: 4, kind: input, shape index: {}]
  %s5 = inlined_call_operand.vmem [shape: f32[1,512], index: 5, kind: input, shape index: {}]
  %s6 = inlined_call_operand.hbm [shape: f32[1,512], index: 6, kind: input, shape index: {}]
  %s7 = inlined_call_operand.hbm [shape: f32[1,512], index: 7, kind: input, shape index: {}]
  %s8 = inlined_call_operand.hbm [shape: bf16[512,512], index: 8, kind: input, shape index: {}]
  %s9 = inlined_call_operand.vmem [shape: f32[1,512], index: 9, kind: input, shape index: {}]
  %s10 = inlined_call_operand.hbm [shape: bf16[512,128], index: 10, kind: input, shape index: {}]
  %s11 = inlined_call_operand.vmem [shape: f32[1,128], index: 11, kind: input, shape index: {}]
  %s12 = inlined_call_operand.hbm [shape: f32[8,128], index: 12, kind: output, shape index: {}]
  %s13 = sld [smem:[#allocation0]]
  $region86: #{tpu_custom_call.1} parent=0
    _
  %s15 = ssub.s32 1, %s13
  %s16 = scalar_select 0, %s15, %s13
  $region1: #{tpu_custom_call.1} parent=0
    #allocation2 [shape = 'u8[4096]{0}', space=vmem, size = 0x1000, scoped, tag = 'input window, operand 2, single buffered']
    #allocation3 [shape = 's32[1]{0}', space=sflag, size = 0x4, scoped, tag = 'scoped memory for tpu_custom_call.1']
    #allocation4 [shape = 's32[1]{0}', space=sflag, size = 0x4, scoped, tag = 'scoped memory for tpu_custom_call.1']
    #allocation5 [shape = 'u8[32768]{0}', space=vmem, size = 0x8000, scoped, tag = 'input window, operand 3, single buffered']
    #allocation6 [shape = 's32[1]{0}', space=sflag, size = 0x4, scoped, tag = 'scoped memory for tpu_custom_call.1']
    #allocation7 [shape = 'u8[32768]{0}', space=vmem, size = 0x8000, scoped, tag = 'input window, operand 4, single buffered']
    #allocation8 [shape = 'u8[2048]{0}', space=vmem, size = 0x800, scoped, tag = 'input window, operand 6, single buffered']
    #allocation9 [shape = 's32[1]{0}', space=sflag, size = 0x4, scoped, tag = 'scoped memory for tpu_custom_call.1']
    #allocation10 [shape = 'u8[2048]{0}', space=vmem, size = 0x800, scoped, tag = 'input window, operand 7, single buffered']
    #allocation11 [shape = 'u8[524288]{0}', space=vmem, size = 0x80000, scoped, tag = 'input window, operand 8, single buffered']
    #allocation12 [shape = 's32[1]{0}', space=sflag, size = 0x4, scoped, tag = 'scoped memory for tpu_custom_call.1']
    #allocation13 [shape = 'u8[131072]{0}', space=vmem, size = 0x20000, scoped, tag = 'input window, operand 10, single buffered']
    #allocation14 [shape = 'u8[4096]{0}', space=vmem, size = 0x1000, scoped, tag = 'output window, operand 0, single buffered']
    %17 = vsyncpa [#allocation3], 0
    %18 = vsyncpa [#allocation6], 0
    %19 = vsyncpa [#allocation9], 0
    %20 = vsyncpa [#allocation12], 0
    %21 = vsyncpa [#allocation4], 0
    // Predicated region
    $region2: #{tpu_custom_call.1} parent=1 // pred_check
      _
    $region3: #{tpu_custom_call.1} parent=1 // pred_check_branch
      %23 = sbr.rel (0) target = $region5
    $region4: #{tpu_custom_call.1} parent=1 // pred_region
      _
    $region5: #{tpu_custom_call.1} parent=1 // pred_fallthru
      _
    // Predicated region
    $region6: #{tpu_custom_call.1} parent=1 // pred_check
      _
    $region7: #{tpu_custom_call.1} parent=1 // pred_check_branch
      %25 = sbr.rel (0) target = $region9
    $region8: #{tpu_custom_call.1} parent=1 // pred_region
      _
    $region9: #{tpu_custom_call.1} parent=1 // pred_fallthru
      _
    // Predicated region
    $region10: #{tpu_custom_call.1} parent=1 // pred_check
      _
    $region11: #{tpu_custom_call.1} parent=1 // pred_check_branch
      %27 = sbr.rel (0) target = $region13
    $region12: #{tpu_custom_call.1} parent=1 // pred_region
      %29 = vsyncadd [#allocation3], 0
      %s31 = sshll.u32 %s2, 4
      %s32 = int_to_ptr.hbm [resolvable:$true] %s31
      %s33 = sshll.u32 [#allocation2], 4
      %s34 = int_to_ptr.vmem [resolvable:$true] %s33
      %36 = dma.hbm_to_vmem [thread:$0]  %s32, 128, %s34, [#allocation3]
    $region13: #{tpu_custom_call.1} parent=1 // pred_fallthru
      _
    // Predicated region
    $region14: #{tpu_custom_call.1} parent=1 // pred_check
      _
    $region15: #{tpu_custom_call.1} parent=1 // pred_check_branch
      %38 = sbr.rel (0) target = $region17
    $region16: #{tpu_custom_call.1} parent=1 // pred_region
      %40 = vsyncadd [#allocation6], 0
      %s41 = sshll.u32 %s3, 4
      %s42 = int_to_ptr.hbm [resolvable:$true] %s41
      %s43 = sshll.u32 [#allocation5], 4
      %s44 = int_to_ptr.vmem [resolvable:$true] %s43
      %49 = dma.hbm_to_vmem [thread:$0]  %s42, 1024, %s44, [#allocation6], 256, 256, 16
    $region17: #{tpu_custom_call.1} parent=1 // pred_fallthru
      _
    // Predicated region
    $region18: #{tpu_custom_call.1} parent=1 // pred_check
      _
    $region19: #{tpu_custom_call.1} parent=1 // pred_check_branch
      %51 = sbr.rel (0) target = $region21
    $region20: #{tpu_custom_call.1} parent=1 // pred_region
      %53 = vsyncadd [#allocation6], 0
      %s54 = sshll.u32 %s4, 4
      %s55 = int_to_ptr.hbm [resolvable:$true] %s54
      %s56 = sshll.u32 [#allocation7], 4
      %s57 = int_to_ptr.vmem [resolvable:$true] %s56
      %62 = dma.hbm_to_vmem [thread:$0]  %s55, 1024, %s57, [#allocation6], 256, 256, 16
    $region21: #{tpu_custom_call.1} parent=1 // pred_fallthru
      _
    // Predicated region
    $region22: #{tpu_custom_call.1} parent=1 // pred_check
      _
    $region23: #{tpu_custom_call.1} parent=1 // pred_check_branch
      %64 = sbr.rel (0) target = $region25
    $region24: #{tpu_custom_call.1} parent=1 // pred_region
      _
    $region25: #{tpu_custom_call.1} parent=1 // pred_fallthru
      _
    // Predicated region
    $region26: #{tpu_custom_call.1} parent=1 // pred_check
      _
    $region27: #{tpu_custom_call.1} parent=1 // pred_check_branch
      %66 = sbr.rel (0) target = $region29
    $region28: #{tpu_custom_call.1} parent=1 // pred_region
      %68 = vsyncadd [#allocation9], 0
      %s70 = sshll.u32 %s6, 4
      %s71 = int_to_ptr.hbm [resolvable:$true] %s70
      %s72 = sshll.u32 [#allocation8], 4
      %s73 = int_to_ptr.vmem [resolvable:$true] %s72
      %75 = dma.hbm_to_vmem [thread:$0]  %s71, 64, %s73, [#allocation9]
    $region29: #{tpu_custom_call.1} parent=1 // pred_fallthru
      _
    // Predicated region
    $region30: #{tpu_custom_call.1} parent=1 // pred_check
      _
    $region31: #{tpu_custom_call.1} parent=1 // pred_check_branch
      %77 = sbr.rel (0) target = $region33
    $region32: #{tpu_custom_call.1} parent=1 // pred_region
      %79 = vsyncadd [#allocation9], 0
      %s81 = sshll.u32 %s7, 4
      %s82 = int_to_ptr.hbm [resolvable:$true] %s81
      %s83 = sshll.u32 [#allocation10], 4
      %s84 = int_to_ptr.vmem [resolvable:$true] %s83
      %86 = dma.hbm_to_vmem [thread:$0]  %s82, 64, %s84, [#allocation9]
    $region33: #{tpu_custom_call.1} parent=1 // pred_fallthru
      _
    // Predicated region
    $region34: #{tpu_custom_call.1} parent=1 // pred_check
      _
    $region35: #{tpu_custom_call.1} parent=1 // pred_check_branch
      %88 = sbr.rel (0) target = $region37
    $region36: #{tpu_custom_call.1} parent=1 // pred_region
      %90 = vsyncadd [#allocation12], 0
      %s91 = sshll.u32 %s8, 4
      %s92 = int_to_ptr.hbm [resolvable:$true] %s91
      %s93 = sshll.u32 [#allocation11], 4
      %s94 = int_to_ptr.vmem [resolvable:$true] %s93
      %99 = dma.hbm_to_vmem [thread:$0]  %s92, 16384, %s94, [#allocation12], 256, 256, 16
    $region37: #{tpu_custom_call.1} parent=1 // pred_fallthru
      _
    // Predicated region
    $region38: #{tpu_custom_call.1} parent=1 // pred_check
      _
    $region39: #{tpu_custom_call.1} parent=1 // pred_check_branch
      %101 = sbr.rel (0) target = $region41
    $region40: #{tpu_custom_call.1} parent=1 // pred_region
      _
    $region41: #{tpu_custom_call.1} parent=1 // pred_fallthru
      _
    // Predicated region
    $region42: #{tpu_custom_call.1} parent=1 // pred_check
      _
    $region43: #{tpu_custom_call.1} parent=1 // pred_check_branch
      %103 = sbr.rel (0) target = $region45
    $region44: #{tpu_custom_call.1} parent=1 // pred_region
      %105 = vsyncadd [#allocation12], 0
      %s106 = sshll.u32 %s10, 4
      %s107 = int_to_ptr.hbm [resolvable:$true] %s106
      %s108 = sshll.u32 [#allocation13], 4
      %s109 = int_to_ptr.vmem [resolvable:$true] %s108
      %114 = dma.hbm_to_vmem [thread:$0]  %s107, 4096, %s109, [#allocation12], 64, 64, 4
    $region45: #{tpu_custom_call.1} parent=1 // pred_fallthru
      _
    // Predicated region
    $region46: #{tpu_custom_call.1} parent=1 // pred_check
      _
    $region47: #{tpu_custom_call.1} parent=1 // pred_check_branch
      %116 = sbr.rel (0) target = $region49
    $region48: #{tpu_custom_call.1} parent=1 // pred_region
      _
    $region49: #{tpu_custom_call.1} parent=1 // pred_fallthru
      _
    // Predicated region
    $region50: #{tpu_custom_call.1} parent=1 // pred_check
      _
    $region51: #{tpu_custom_call.1} parent=1 // pred_check_branch
      %118 = sbr.rel (0) target = $region53
    $region52: #{tpu_custom_call.1} parent=1 // pred_region
      %120 = dma.done [#allocation3], 128
    $region53: #{tpu_custom_call.1} parent=1 // pred_fallthru
      _
    // Predicated region
    $region54: #{tpu_custom_call.1} parent=1 // pred_check
      _
    $region55: #{tpu_custom_call.1} parent=1 // pred_check_branch
      %122 = sbr.rel (0) target = $region57
    $region56: #{tpu_custom_call.1} parent=1 // pred_region
      %124 = dma.done [#allocation6], 1024
    $region57: #{tpu_custom_call.1} parent=1 // pred_fallthru
      _
    // Predicated region
    $region58: #{tpu_custom_call.1} parent=1 // pred_check
      _
    $region59: #{tpu_custom_call.1} parent=1 // pred_check_branch
      %126 = sbr.rel (0) target = $region61
    $region60: #{tpu_custom_call.1} parent=1 // pred_region
      %128 = dma.done [#allocation6], 1024
    $region61: #{tpu_custom_call.1} parent=1 // pred_fallthru
      _
    // Predicated region
    $region62: #{tpu_custom_call.1} parent=1 // pred_check
      _
    $region63: #{tpu_custom_call.1} parent=1 // pred_check_branch
      %130 = sbr.rel (0) target = $region65
    $region64: #{tpu_custom_call.1} parent=1 // pred_region
      %132 = dma.done [#allocation9], 64
    $region65: #{tpu_custom_call.1} parent=1 // pred_fallthru
      _
    // Predicated region
    $region66: #{tpu_custom_call.1} parent=1 // pred_check
      _
    $region67: #{tpu_custom_call.1} parent=1 // pred_check_branch
      %134 = sbr.rel (0) target = $region69
    $region68: #{tpu_custom_call.1} parent=1 // pred_region
      %136 = dma.done [#allocation9], 64
    $region69: #{tpu_custom_call.1} parent=1 // pred_fallthru
      _
    // Predicated region
    $region70: #{tpu_custom_call.1} parent=1 // pred_check
      _
    $region71: #{tpu_custom_call.1} parent=1 // pred_check_branch
      %138 = sbr.rel (0) target = $region73
    $region72: #{tpu_custom_call.1} parent=1 // pred_region
      %140 = dma.done [#allocation12], 16384
    $region73: #{tpu_custom_call.1} parent=1 // pred_fallthru
      _
    // Predicated region
    $region74: #{tpu_custom_call.1} parent=1 // pred_check
      _
    $region75: #{tpu_custom_call.1} parent=1 // pred_check_branch
      %142 = sbr.rel (0) target = $region77
    $region76: #{tpu_custom_call.1} parent=1 // pred_region
      %144 = dma.done [#allocation12], 4096
    $region77: #{tpu_custom_call.1} parent=1 // pred_fallthru
      _
    %v146 = vld [vmem:[%s0] sm:$0xff]
    %v147 = vmul.f32 %v146, 6.2831855
    %v148 = vand.u32 2147483647, %v147
    %vm149 = vcmp.le.f32.partialorder %v148, 0.7853982
    %vm150 = vcmp.lt.s32.totalorder %v147, 0
    %v151 = vand.u32 %v147, 2139095040
    %v152 = vshrl.u32 %v151, 23
    %v153 = vsub.s32 %v152, 127
    %v154 = vand.u32 2147483647, %v147
    %v155 = vand.u32 %v154, 8388607
    %v156 = vor.u32 %v155, 8388608
    %v157 = vsub.s32 0, %v156
    %v158 = vadd.s32 %v153, 1
    %vm159 = vcmp.gt.s32.totalorder %v158, 0
    %v160 = vsel %vm159, %v158, 0
    %v161 = vshrl.u32 %v160, 5
    %v162 = vand.u32 %v160, 31
    %v163 = vsub.s32 32, %v162
    %v164 = vshrl.u32 683565275, %v163
    %v165 = vshll.u32 683565275, %v162
    %v166 = vshrl.u32 2475754826, %v163
    %v167 = vor.u32 %v165, %v166
    %v168 = vshll.u32 2475754826, %v162
    %v169 = vshrl.u32 2131351028, %v163
    %v170 = vor.u32 %v168, %v169
    %v171 = vshll.u32 2131351028, %v162
    %v172 = vshrl.u32 2102212464, %v163
    %v173 = vor.u32 %v171, %v172
    %v174 = vshll.u32 2102212464, %v162
    %v175 = vshrl.u32 920167782, %v163
    %v176 = vor.u32 %v174, %v175
    %v177 = vshll.u32 920167782, %v162
    %v178 = vshrl.u32 1326507024, %v163
    %v179 = vor.u32 %v177, %v178
    %vm180 = vcmp.lt.s32.totalorder %v161, 1
    %vm181 = vcmp.lt.s32.totalorder %v161, 2
    %vm182 = vcmp.lt.s32.totalorder %v161, 3
    %vm183 = vcmp.lt.s32.totalorder %v161, 4
    %v184 = vsel %vm180, %v164, %v167
    %v185 = vsel %vm183, %v173, 2102212464
    %v186 = vsel %vm182, %v170, %v185
    %v187 = vsel %vm181, %v184, %v186
    %v188 = vsel %vm180, %v167, %v170
    %v189 = vsel %vm183, %v176, 920167782
    %v190 = vsel %vm182, %v173, %v189
    %v191 = vsel %vm181, %v188, %v190
    %v192 = vsel %vm180, %v170, %v173
    %v193 = vsel %vm183, %v179, 1326507024
    %v194 = vsel %vm182, %v176, %v193
    %v195 = vsel %vm181, %v192, %v194
    %v196 = vshll.u32 %v156, 8
    %v197 = vand.u32 %v196, 65535
    %v198 = vshrl.u32 %v196, 16
    %v199 = vand.u32 %v195, 65535
    %v200 = vshrl.u32 %v195, 16
    %v201 = vmul.u32 %v197, %v199
    %v202 = vmul.u32 %v197, %v200
    %v203 = vmul.u32 %v198, %v199
    %v204 = vmul.u32 %v198, %v200
    %v205 = vshll.u32 %v202, 16
    %v206 = vshrl.u32 %v202, 16
    %v207 = vshll.u32 %v203, 16
    %v208 = vshrl.u32 %v203, 16
    %vm209 = vc.u32 %v201, %v205
    %v210 = vsel %vm209, 1, 0
    %v211 = vadd.s32 %v201, %v205
    %v212 = vadd.s32 %v204, %v210
    %vm213 = vc.u32 %v211, %v207
    %v214 = vsel %vm213, 1, 0
    %v215 = vadd.s32 %v211, %v207
    %v216 = vadd.s32 %v212, %v214
    %v217 = vadd.s32 %v216, %v206
    %v218 = vadd.s32 %v217, %v208
    %v219 = vand.u32 %v196, 65535
    %v220 = vshrl.u32 %v196, 16
    %v221 = vand.u32 %v191, 65535
    %v222 = vshrl.u32 %v191, 16
    %v223 = vmul.u32 %v219, %v221
    %v224 = vmul.u32 %v219, %v222
    %v225 = vmul.u32 %v220, %v221
    %v226 = vmul.u32 %v220, %v222
    %v227 = vshll.u32 %v224, 16
    %v228 = vshrl.u32 %v224, 16
    %v229 = vshll.u32 %v225, 16
    %v230 = vshrl.u32 %v225, 16
    %vm231 = vc.u32 %v223, %v227
    %v232 = vsel %vm231, 1, 0
    %v233 = vadd.s32 %v223, %v227
    %v234 = vadd.s32 %v226, %v232
    %vm235 = vc.u32 %v233, %v229
    %v236 = vsel %vm235, 1, 0
    %v237 = vadd.s32 %v233, %v229
    %v238 = vadd.s32 %v234, %v236
    %v239 = vadd.s32 %v238, %v228
    %v240 = vadd.s32 %v239, %v230
    %v241 = vmul.u32 %v196, %v187
    %v242 = vadd.s32 %v218, %v237
    %vm243 = vc.u32 %v218, %v237
    %v244 = vadd.s32 %v240, 1
    %v245 = vsel %vm243, %v244, %v240
    %v246 = vadd.s32 %v241, %v245
    %v247 = vadd.s32 %v246, 536870912
    %v248 = vshrl.u32 %v247, 30
    %v249 = vshll.u32 %v248, 30
    %v250 = vsub.s32 %v246, %v249
    %vm251 = vcmp.lt.s32.totalorder %v250, 0
    %v252 = vsub.s32 0, %v250
    %v253 = vsel %vm251, %v252, %v250
    %v254 = vclz %v253
    %v255 = vsub.s32 %v254, 2
    %vm256 = vcmp.gt.s32.totalorder 0, %v255
    %v257 = vsel %vm256, 0, %v255
    %v258 = vsub.s32 32, %v257
    %v259 = vshll.u32 %v250, %v257
    %v260 = vshrl.u32 %v242, %v258
    %v261 = vor.u32 %v259, %v260
    %v262 = vsub.s32 4294967266, %v257
    %v263 = vadd.s32 %v262, 127
    %v264 = vshll.u32 %v263, 23
    %v265 = vor.u32 4788187, %v264
    %v266 = vand.u32 2147483647, %v265
    %v268 = vcvt.s32.f32 %v261
    %v269 = vmul.f32 %v268, %v266
    %v270 = vxor.u32 %v269, 2147483648
    %v271 = vsel %vm150, %v270, %v269
    %v272 = vsub.s32 4, %v248
    %v273 = vsel %vm150, %v272, %v248
    %v274 = vsel %vm149, %v147, %v271
    %v275 = vsel %vm149, 0, %v273
    %v276 = vmul.f32 %v274, %v274
    %v277 = vmul.f32 %v276, -0.001358992
    %v278 = vadd.f32 %v277, 0.041655596
    %v279 = vmul.f32 %v276, %v278
    %v280 = vadd.f32 %v279, -0.4999988
    %v281 = vmul.f32 %v276, %v280
    %v282 = vadd.f32 1.0, %v281
    %v283 = vmul.f32 %v274, %v274
    %v284 = vmul.f32 %v283, -0.00019511016
    %v285 = vadd.f32 %v284, 0.008332121
    %v286 = vmul.f32 %v283, %v285
    %v287 = vadd.f32 %v286, -0.16666654
    %v288 = vmul.f32 %v283, %v287
    %v289 = vadd.f32 %v288, 1.0
    %v290 = vmul.f32 %v289, %v274
    %vm291 = vweird.f32 %v147
    %v292 = vand.u32 %v275, 3
    %vm293 = vcmp.lt.s32.totalorder %v292, 2
    %vm294 = vcmp.eq.s32.totalorder %v292, 0
    %v295 = vxor.u32 %v290, 2147483648
    %v296 = vsel %vm294, %v282, %v295
    %vm297 = vcmp.eq.s32.totalorder %v292, 2
    %v298 = vxor.u32 %v282, 2147483648
    %v299 = vsel %vm297, %v298, %v290
    %v300 = vsel %vm293, %v296, %v299
    %v301 = vsel %vm291, nan, %v300
    %v302 = vand.u32 2147483647, %v147
    %vm303 = vcmp.le.f32.partialorder %v302, 0.7853982
    %vm304 = vcmp.lt.s32.totalorder %v147, 0
    %v305 = vand.u32 %v147, 2139095040
    %v306 = vshrl.u32 %v305, 23
    %v307 = vsub.s32 %v306, 127
    %v308 = vand.u32 2147483647, %v147
    %v309 = vand.u32 %v308, 8388607
    %v310 = vor.u32 %v309, 8388608
    %v311 = vsub.s32 0, %v310
    %v312 = vadd.s32 %v307, 1
    %vm313 = vcmp.gt.s32.totalorder %v312, 0
    %v314 = vsel %vm313, %v312, 0
    %v315 = vshrl.u32 %v314, 5
    %v316 = vand.u32 %v314, 31
    %v317 = vsub.s32 32, %v316
    %v318 = vshrl.u32 683565275, %v317
    %v319 = vshll.u32 683565275, %v316
    %v320 = vshrl.u32 2475754826, %v317
    %v321 = vor.u32 %v319, %v320
    %v322 = vshll.u32 2475754826, %v316
    %v323 = vshrl.u32 2131351028, %v317
    %v324 = vor.u32 %v322, %v323
    %v325 = vshll.u32 2131351028, %v316
    %v326 = vshrl.u32 2102212464, %v317
    %v327 = vor.u32 %v325, %v326
    %v328 = vshll.u32 2102212464, %v316
    %v329 = vshrl.u32 920167782, %v317
    %v330 = vor.u32 %v328, %v329
    %v331 = vshll.u32 920167782, %v316
    %v332 = vshrl.u32 1326507024, %v317
    %v333 = vor.u32 %v331, %v332
    %vm334 = vcmp.lt.s32.totalorder %v315, 1
    %vm335 = vcmp.lt.s32.totalorder %v315, 2
    %vm336 = vcmp.lt.s32.totalorder %v315, 3
    %vm337 = vcmp.lt.s32.totalorder %v315, 4
    %v338 = vsel %vm334, %v318, %v321
    %v339 = vsel %vm337, %v327, 2102212464
    %v340 = vsel %vm336, %v324, %v339
    %v341 = vsel %vm335, %v338, %v340
    %v342 = vsel %vm334, %v321, %v324
    %v343 = vsel %vm337, %v330, 920167782
    %v344 = vsel %vm336, %v327, %v343
    %v345 = vsel %vm335, %v342, %v344
    %v346 = vsel %vm334, %v324, %v327
    %v347 = vsel %vm337, %v333, 1326507024
    %v348 = vsel %vm336, %v330, %v347
    %v349 = vsel %vm335, %v346, %v348
    %v350 = vshll.u32 %v310, 8
    %v351 = vand.u32 %v350, 65535
    %v352 = vshrl.u32 %v350, 16
    %v353 = vand.u32 %v349, 65535
    %v354 = vshrl.u32 %v349, 16
    %v355 = vmul.u32 %v351, %v353
    %v356 = vmul.u32 %v351, %v354
    %v357 = vmul.u32 %v352, %v353
    %v358 = vmul.u32 %v352, %v354
    %v359 = vshll.u32 %v356, 16
    %v360 = vshrl.u32 %v356, 16
    %v361 = vshll.u32 %v357, 16
    %v362 = vshrl.u32 %v357, 16
    %vm363 = vc.u32 %v355, %v359
    %v364 = vsel %vm363, 1, 0
    %v365 = vadd.s32 %v355, %v359
    %v366 = vadd.s32 %v358, %v364
    %vm367 = vc.u32 %v365, %v361
    %v368 = vsel %vm367, 1, 0
    %v369 = vadd.s32 %v365, %v361
    %v370 = vadd.s32 %v366, %v368
    %v371 = vadd.s32 %v370, %v360
    %v372 = vadd.s32 %v371, %v362
    %v373 = vand.u32 %v350, 65535
    %v374 = vshrl.u32 %v350, 16
    %v375 = vand.u32 %v345, 65535
    %v376 = vshrl.u32 %v345, 16
    %v377 = vmul.u32 %v373, %v375
    %v378 = vmul.u32 %v373, %v376
    %v379 = vmul.u32 %v374, %v375
    %v380 = vmul.u32 %v374, %v376
    %v381 = vshll.u32 %v378, 16
    %v382 = vshrl.u32 %v378, 16
    %v383 = vshll.u32 %v379, 16
    %v384 = vshrl.u32 %v379, 16
    %vm385 = vc.u32 %v377, %v381
    %v386 = vsel %vm385, 1, 0
    %v387 = vadd.s32 %v377, %v381
    %v388 = vadd.s32 %v380, %v386
    %vm389 = vc.u32 %v387, %v383
    %v390 = vsel %vm389, 1, 0
    %v391 = vadd.s32 %v387, %v383
    %v392 = vadd.s32 %v388, %v390
    %v393 = vadd.s32 %v392, %v382
    %v394 = vadd.s32 %v393, %v384
    %v395 = vmul.u32 %v350, %v341
    %v396 = vadd.s32 %v372, %v391
    %vm397 = vc.u32 %v372, %v391
    %v398 = vadd.s32 %v394, 1
    %v399 = vsel %vm397, %v398, %v394
    %v400 = vadd.s32 %v395, %v399
    %v401 = vadd.s32 %v400, 536870912
    %v402 = vshrl.u32 %v401, 30
    %v403 = vshll.u32 %v402, 30
    %v404 = vsub.s32 %v400, %v403
    %vm405 = vcmp.lt.s32.totalorder %v404, 0
    %v406 = vsub.s32 0, %v404
    %v407 = vsel %vm405, %v406, %v404
    %v408 = vclz %v407
    %v409 = vsub.s32 %v408, 2
    %vm410 = vcmp.gt.s32.totalorder 0, %v409
    %v411 = vsel %vm410, 0, %v409
    %v412 = vsub.s32 32, %v411
    %v413 = vshll.u32 %v404, %v411
    %v414 = vshrl.u32 %v396, %v412
    %v415 = vor.u32 %v413, %v414
    %v416 = vsub.s32 4294967266, %v411
    %v417 = vadd.s32 %v416, 127
    %v418 = vshll.u32 %v417, 23
    %v419 = vor.u32 4788187, %v418
    %v420 = vand.u32 2147483647, %v419
    %v422 = vcvt.s32.f32 %v415
    %v423 = vmul.f32 %v422, %v420
    %v424 = vxor.u32 %v423, 2147483648
    %v425 = vsel %vm304, %v424, %v423
    %v426 = vsub.s32 4, %v402
    %v427 = vsel %vm304, %v426, %v402
    %v428 = vsel %vm303, %v147, %v425
    %v429 = vsel %vm303, 0, %v427
    %v430 = vmul.f32 %v428, %v428
    %v431 = vmul.f32 %v430, -0.001358992
    %v432 = vadd.f32 %v431, 0.041655596
    %v433 = vmul.f32 %v430, %v432
    %v434 = vadd.f32 %v433, -0.4999988
    %v435 = vmul.f32 %v430, %v434
    %v436 = vadd.f32 1.0, %v435
    %v437 = vmul.f32 %v428, %v428
    %v438 = vmul.f32 %v437, -0.00019511016
    %v439 = vadd.f32 %v438, 0.008332121
    %v440 = vmul.f32 %v437, %v439
    %v441 = vadd.f32 %v440, -0.16666654
    %v442 = vmul.f32 %v437, %v441
    %v443 = vadd.f32 %v442, 1.0
    %v444 = vmul.f32 %v443, %v428
    %vm445 = vweird.f32 %v147
    %v446 = vadd.s32 %v429, 3
    %v447 = vand.u32 %v446, 3
    %vm448 = vcmp.lt.s32.totalorder %v447, 2
    %vm449 = vcmp.eq.s32.totalorder %v447, 0
    %v450 = vxor.u32 %v444, 2147483648
    %v451 = vsel %vm449, %v436, %v450
    %vm452 = vcmp.eq.s32.totalorder %v447, 2
    %v453 = vxor.u32 %v436, 2147483648
    %v454 = vsel %vm452, %v453, %v444
    %v455 = vsel %vm448, %v451, %v454
    %v456 = vsel %vm445, nan, %v455
    %v457 = vld [vmem:[%s1] sm:$0xff]
    %v458 = vpack.c.bf16 %v457, %v457
    %v459 = vld [vmem:[#allocation5] sm:$0xff]
    %v460 = vld [vmem:[#allocation5 + $0x8] sm:$0xff]
    %v461 = vld [vmem:[#allocation5 + $0x10] sm:$0xff]
    %v462 = vld [vmem:[#allocation5 + $0x18] sm:$0xff]
    %v463 = vld [vmem:[#allocation5 + $0x20] sm:$0xff]
    %v464 = vld [vmem:[#allocation5 + $0x28] sm:$0xff]
    %v465 = vld [vmem:[#allocation5 + $0x30] sm:$0xff]
    %v466 = vld [vmem:[#allocation5 + $0x38] sm:$0xff]
    %v467 = vld [vmem:[#allocation2] sm:$0xff]
    %v468 = vpack.c.bf16 %v467, %v467
    %v469 = vld [vmem:[#allocation7] sm:$0xff]
    %v470 = vld [vmem:[#allocation7 + $0x8] sm:$0xff]
    %v471 = vld [vmem:[#allocation7 + $0x10] sm:$0xff]
    %v472 = vld [vmem:[#allocation7 + $0x18] sm:$0xff]
    %v473 = vld [vmem:[#allocation7 + $0x20] sm:$0xff]
    %v474 = vld [vmem:[#allocation7 + $0x28] sm:$0xff]
    %v475 = vld [vmem:[#allocation7 + $0x30] sm:$0x77]
    %v476 = vld [vmem:[#allocation7 + $0x38] sm:$0x77]
    %v485 = vunpack.c.l.b16 %v469
    %v486 = vunpack.c.h.b16 %v469
    %v487 = vunpack.c.l.b16 %v470
    %v488 = vunpack.c.h.b16 %v470
    %v489 = vunpack.c.l.b16 %v471
    %v490 = vunpack.c.h.b16 %v471
    %v491 = vunpack.c.l.b16 %v472
    %v492 = vunpack.c.h.b16 %v472
    %v493 = vunpack.c.l.b16 %v473
    %v494 = vunpack.c.h.b16 %v473
    %v495 = vunpack.c.l.b16 %v474
    %v496 = vunpack.c.h.b16 %v474
    %v497 = vunpack.c.l.b16 %v475
    %v498 = vunpack.c.h.b16 %v475
    %v499 = vunpack.c.l.b16 %v476
    %v500 = vunpack.c.h.b16 %v476
    %v501 = vpack.c.b16 %v489, %v485
    %v502 = vpack.c.b16 %v490, %v486
    %v503 = vpack.c.b16 %v491, %v487
    %v504 = vpack.c.b16 %v492, %v488
    %v505 = vpack.c.b16 %v497, %v493
    %v506 = vpack.c.b16 %v498, %v494
    %v507 = vpack.c.b16 %v499, %v495
    %v508 = vpack.c.b16 %v500, %v496
    %vm513 = vcmask 244736
    %v515 = vsel %vm513, %v468, 0
    %vm517 = vcmask 1046528
    %v519 = vsel %vm517, %v505, 0
    %v522 = vsel %vm517, %v506, 0
    %v525 = vsel %vm517, %v507, 0
    %v528 = vsel %vm517, %v508, 0
    %530 = vmatpush.bf16.msra.mxu0 0
    %531 = vmatpush.bf16.msra.mxu0 0
    %532 = vmatpush.bf16.msra.mxu0 0
    %533 = vmatpush.bf16.msra.mxu0 0
    %534 = vmatpush.bf16.msra.mxu0 0
    %535 = vmatpush.bf16.msra.mxu0 0
    %536 = vmatpush.bf16.msra.mxu0 %v519
    %537 = vmatpush.bf16.msra.mxu0 %v501
    %538 = vmatmul.bf16.gmra.mxu0 %v515
    %v539 = vpop.f32.mrf.mxu0
    %v540 = vadd.f32 0.0, %v539
    %v541 = vpop.f32.mrf.mxu0
    %542 = vdwg.mxu0
    %543 = vmatpush.bf16.msra.mxu0 0
    %544 = vmatpush.bf16.msra.mxu0 0
    %545 = vmatpush.bf16.msra.mxu0 0
    %546 = vmatpush.bf16.msra.mxu0 0
    %547 = vmatpush.bf16.msra.mxu0 0
    %548 = vmatpush.bf16.msra.mxu0 0
    %549 = vmatpush.bf16.msra.mxu0 %v522
    %550 = vmatpush.bf16.msra.mxu0 %v502
    %551 = vmatmul.bf16.gmra.mxu0 %v515
    %v552 = vpop.f32.mrf.mxu0
    %v553 = vadd.f32 0.0, %v552
    %v554 = vpop.f32.mrf.mxu0
    %555 = vdwg.mxu0
    %556 = vmatpush.bf16.msra.mxu0 0
    %557 = vmatpush.bf16.msra.mxu0 0
    %558 = vmatpush.bf16.msra.mxu0 0
    %559 = vmatpush.bf16.msra.mxu0 0
    %560 = vmatpush.bf16.msra.mxu0 0
    %561 = vmatpush.bf16.msra.mxu0 0
    %562 = vmatpush.bf16.msra.mxu0 %v525
    %563 = vmatpush.bf16.msra.mxu0 %v503
    %564 = vmatmul.bf16.gmra.mxu0 %v515
    %v565 = vpop.f32.mrf.mxu0
    %v566 = vadd.f32 0.0, %v565
    %v567 = vpop.f32.mrf.mxu0
    %568 = vdwg.mxu0
    %569 = vmatpush.bf16.msra.mxu0 0
    %570 = vmatpush.bf16.msra.mxu0 0
    %571 = vmatpush.bf16.msra.mxu0 0
    %572 = vmatpush.bf16.msra.mxu0 0
    %573 = vmatpush.bf16.msra.mxu0 0
    %574 = vmatpush.bf16.msra.mxu0 0
    %575 = vmatpush.bf16.msra.mxu0 %v528
    %576 = vmatpush.bf16.msra.mxu0 %v504
    %577 = vmatmul.bf16.gmra.mxu0 %v515
    %v578 = vpop.f32.mrf.mxu0
    %v579 = vadd.f32 0.0, %v578
    %v580 = vpop.f32.mrf.mxu0
    %581 = vdwg.mxu0
    %v590 = vunpack.c.l.b16 %v459
    %v591 = vunpack.c.h.b16 %v459
    %v592 = vunpack.c.l.b16 %v460
    %v593 = vunpack.c.h.b16 %v460
    %v594 = vunpack.c.l.b16 %v461
    %v595 = vunpack.c.h.b16 %v461
    %v596 = vunpack.c.l.b16 %v462
    %v597 = vunpack.c.h.b16 %v462
    %v598 = vunpack.c.l.b16 %v463
    %v599 = vunpack.c.h.b16 %v463
    %v600 = vunpack.c.l.b16 %v464
    %v601 = vunpack.c.h.b16 %v464
    %v602 = vunpack.c.l.b16 %v465
    %v603 = vunpack.c.h.b16 %v465
    %v604 = vunpack.c.l.b16 %v466
    %v605 = vunpack.c.h.b16 %v466
    %v606 = vpack.c.b16 %v594, %v590
    %v607 = vpack.c.b16 %v595, %v591
    %v608 = vpack.c.b16 %v596, %v592
    %v609 = vpack.c.b16 %v597, %v593
    %v610 = vpack.c.b16 %v602, %v598
    %v611 = vpack.c.b16 %v603, %v599
    %v612 = vpack.c.b16 %v604, %v600
    %v613 = vpack.c.b16 %v605, %v601
    %vm622 = vcmask 261120
    %v624 = vsel %vm622, %v458, 0
    %626 = vmatpush.bf16.msra.mxu0 0
    %627 = vmatpush.bf16.msra.mxu0 0
    %628 = vmatpush.bf16.msra.mxu0 0
    %629 = vmatpush.bf16.msra.mxu0 0
    %630 = vmatpush.bf16.msra.mxu0 0
    %631 = vmatpush.bf16.msra.mxu0 0
    %632 = vmatpush.bf16.msra.mxu0 %v610
    %633 = vmatpush.bf16.msra.mxu0 %v606
    %634 = vmatmul.bf16.gmra.mxu0 %v624
    %v635 = vpop.f32.mrf.mxu0
    %v636 = vadd.f32 %v540, %v635
    %v637 = vpop.f32.mrf.mxu0
    %638 = vdwg.mxu0
    %639 = vmatpush.bf16.msra.mxu0 0
    %640 = vmatpush.bf16.msra.mxu0 0
    %641 = vmatpush.bf16.msra.mxu0 0
    %642 = vmatpush.bf16.msra.mxu0 0
    %643 = vmatpush.bf16.msra.mxu0 0
    %644 = vmatpush.bf16.msra.mxu0 0
    %645 = vmatpush.bf16.msra.mxu0 %v611
    %646 = vmatpush.bf16.msra.mxu0 %v607
    %647 = vmatmul.bf16.gmra.mxu0 %v624
    %v648 = vpop.f32.mrf.mxu0
    %v649 = vadd.f32 %v553, %v648
    %v650 = vpop.f32.mrf.mxu0
    %651 = vdwg.mxu0
    %652 = vmatpush.bf16.msra.mxu0 0
    %653 = vmatpush.bf16.msra.mxu0 0
    %654 = vmatpush.bf16.msra.mxu0 0
    %655 = vmatpush.bf16.msra.mxu0 0
    %656 = vmatpush.bf16.msra.mxu0 0
    %657 = vmatpush.bf16.msra.mxu0 0
    %658 = vmatpush.bf16.msra.mxu0 %v612
    %659 = vmatpush.bf16.msra.mxu0 %v608
    %660 = vmatmul.bf16.gmra.mxu0 %v624
    %v661 = vpop.f32.mrf.mxu0
    %v662 = vadd.f32 %v566, %v661
    %v663 = vpop.f32.mrf.mxu0
    %664 = vdwg.mxu0
    %665 = vmatpush.bf16.msra.mxu0 0
    %666 = vmatpush.bf16.msra.mxu0 0
    %667 = vmatpush.bf16.msra.mxu0 0
    %668 = vmatpush.bf16.msra.mxu0 0
    %669 = vmatpush.bf16.msra.mxu0 0
    %670 = vmatpush.bf16.msra.mxu0 0
    %671 = vmatpush.bf16.msra.mxu0 %v613
    %672 = vmatpush.bf16.msra.mxu0 %v609
    %673 = vmatmul.bf16.gmra.mxu0 %v624
    %v674 = vpop.f32.mrf.mxu0
    %v675 = vadd.f32 %v579, %v674
    %v676 = vpop.f32.mrf.mxu0
    %677 = vdwg.mxu0
    %v678 = vld [vmem:[%s5] sm:$0xf]
    %680 = vset.pattern.permute.xlu0 0
    %681 = vperm.xlu0 %680, %v301
    %v682 = vpop.permute.xlu0 %681
    %v685 = vperm.slane %v678, 0
    %v686 = vperm.slane %v678, 1
    %v687 = vperm.slane %v678, 2
    %v688 = vperm.slane %v678, 3
    %v693 = vmul.f32 %v682, %v685
    %v694 = vmul.f32 %v682, %v686
    %v695 = vmul.f32 %v682, %v687
    %v696 = vmul.f32 %v682, %v688
    %v697 = vadd.f32 %v636, %v693
    %v698 = vadd.f32 %v649, %v694
    %v699 = vadd.f32 %v662, %v695
    %v700 = vadd.f32 %v675, %v696
    %v701 = vld [vmem:[#allocation8] sm:$0xf]
    %703 = vset.pattern.permute.xlu0 0
    %704 = vperm.xlu0 %703, %v456
    %v705 = vpop.permute.xlu0 %704
    %v708 = vperm.slane %v701, 0
    %v709 = vperm.slane %v701, 1
    %v710 = vperm.slane %v701, 2
    %v711 = vperm.slane %v701, 3
    %v716 = vmul.f32 %v705, %v708
    %v717 = vmul.f32 %v705, %v709
    %v718 = vmul.f32 %v705, %v710
    %v719 = vmul.f32 %v705, %v711
    %v720 = vadd.f32 %v697, %v716
    %v721 = vadd.f32 %v698, %v717
    %v722 = vadd.f32 %v699, %v718
    %v723 = vadd.f32 %v700, %v719
    %v724 = vld [vmem:[#allocation10] sm:$0xf]
    %v726 = vperm.slane %v724, 0
    %v727 = vperm.slane %v724, 1
    %v728 = vperm.slane %v724, 2
    %v729 = vperm.slane %v724, 3
    %v734 = vadd.f32 %v720, %v726
    %v735 = vadd.f32 %v721, %v727
    %v736 = vadd.f32 %v722, %v728
    %v737 = vadd.f32 %v723, %v729
    %vm738 = vcmp.gt.f32.partialorder %v734, 0.0
    %vm739 = vcmp.gt.f32.partialorder %v735, 0.0
    %vm740 = vcmp.gt.f32.partialorder %v736, 0.0
    %vm741 = vcmp.gt.f32.partialorder %v737, 0.0
    %v742 = vmul.f32 %v734, 0.01
    %v743 = vmul.f32 %v735, 0.01
    %v744 = vmul.f32 %v736, 0.01
    %v745 = vmul.f32 %v737, 0.01
    %v746 = vsel %vm738, %v734, %v742
    %v747 = vsel %vm739, %v735, %v743
    %v748 = vsel %vm740, %v736, %v744
    %v749 = vsel %vm741, %v737, %v745
    %v750 = vpack.c.bf16 %v746, %v746
    %v751 = vpack.c.bf16 %v747, %v747
    %v752 = vpack.c.bf16 %v748, %v748
    %v753 = vpack.c.bf16 %v749, %v749
    %v754 = vld [vmem:[#allocation11] sm:$0xff]
    %v755 = vld [vmem:[#allocation11 + $0x8] sm:$0xff]
    %v756 = vld [vmem:[#allocation11 + $0x10] sm:$0xff]
    %v757 = vld [vmem:[#allocation11 + $0x18] sm:$0xff]
    %v758 = vld [vmem:[#allocation11 + $0x20] sm:$0xff]
    %v759 = vld [vmem:[#allocation11 + $0x28] sm:$0xff]
    %v760 = vld [vmem:[#allocation11 + $0x30] sm:$0xff]
    %v761 = vld [vmem:[#allocation11 + $0x38] sm:$0xff]
    %v762 = vld [vmem:[#allocation11 + $0x40] sm:$0xff]
    %v763 = vld [vmem:[#allocation11 + $0x48] sm:$0xff]
    %v764 = vld [vmem:[#allocation11 + $0x50] sm:$0xff]
    %v765 = vld [vmem:[#allocation11 + $0x58] sm:$0xff]
    %v766 = vld [vmem:[#allocation11 + $0x60] sm:$0xff]
    %v767 = vld [vmem:[#allocation11 + $0x68] sm:$0xff]
    %v768 = vld [vmem:[#allocation11 + $0x70] sm:$0xff]
    %v769 = vld [vmem:[#allocation11 + $0x78] sm:$0xff]
    %v770 = vld [vmem:[#allocation11 + $0x80] sm:$0xff]
    %v771 = vld [vmem:[#allocation11 + $0x88] sm:$0xff]
    %v772 = vld [vmem:[#allocation11 + $0x90] sm:$0xff]
    %v773 = vld [vmem:[#allocation11 + $0x98] sm:$0xff]
    %v774 = vld [vmem:[#allocation11 + $0xa0] sm:$0xff]
    %v775 = vld [vmem:[#allocation11 + $0xa8] sm:$0xff]
    %v776 = vld [vmem:[#allocation11 + $0xb0] sm:$0xff]
    %v777 = vld [vmem:[#allocation11 + $0xb8] sm:$0xff]
    %v778 = vld [vmem:[#allocation11 + $0xc0] sm:$0xff]
    %v779 = vld [vmem:[#allocation11 + $0xc8] sm:$0xff]
    %v780 = vld [vmem:[#allocation11 + $0xd0] sm:$0xff]
    %v781 = vld [vmem:[#allocation11 + $0xd8] sm:$0xff]
    %v782 = vld [vmem:[#allocation11 + $0xe0] sm:$0xff]
    %v783 = vld [vmem:[#allocation11 + $0xe8] sm:$0xff]
    %v784 = vld [vmem:[#allocation11 + $0xf0] sm:$0xff]
    %v785 = vld [vmem:[#allocation11 + $0xf8] sm:$0xff]
    %v786 = vld [vmem:[#allocation11 + $0x100] sm:$0xff]
    %v787 = vld [vmem:[#allocation11 + $0x108] sm:$0xff]
    %v788 = vld [vmem:[#allocation11 + $0x110] sm:$0xff]
    %v789 = vld [vmem:[#allocation11 + $0x118] sm:$0xff]
    %v790 = vld [vmem:[#allocation11 + $0x120] sm:$0xff]
    %v791 = vld [vmem:[#allocation11 + $0x128] sm:$0xff]
    %v792 = vld [vmem:[#allocation11 + $0x130] sm:$0xff]
    %v793 = vld [vmem:[#allocation11 + $0x138] sm:$0xff]
    %v794 = vld [vmem:[#allocation11 + $0x140] sm:$0xff]
    %v795 = vld [vmem:[#allocation11 + $0x148] sm:$0xff]
    %v796 = vld [vmem:[#allocation11 + $0x150] sm:$0xff]
    %v797 = vld [vmem:[#allocation11 + $0x158] sm:$0xff]
    %v798 = vld [vmem:[#allocation11 + $0x160] sm:$0xff]
    %v799 = vld [vmem:[#allocation11 + $0x168] sm:$0xff]
    %v800 = vld [vmem:[#allocation11 + $0x170] sm:$0xff]
    %v801 = vld [vmem:[#allocation11 + $0x178] sm:$0xff]
    %v802 = vld [vmem:[#allocation11 + $0x180] sm:$0xff]
    %v803 = vld [vmem:[#allocation11 + $0x188] sm:$0xff]
    %v804 = vld [vmem:[#allocation11 + $0x190] sm:$0xff]
    %v805 = vld [vmem:[#allocation11 + $0x198] sm:$0xff]
    %v806 = vld [vmem:[#allocation11 + $0x1a0] sm:$0xff]
    %v807 = vld [vmem:[#allocation11 + $0x1a8] sm:$0xff]
    %v808 = vld [vmem:[#allocation11 + $0x1b0] sm:$0xff]
    %v809 = vld [vmem:[#allocation11 + $0x1b8] sm:$0xff]
    %v810 = vld [vmem:[#allocation11 + $0x1c0] sm:$0xff]
    %v811 = vld [vmem:[#allocation11 + $0x1c8] sm:$0xff]
    %v812 = vld [vmem:[#allocation11 + $0x1d0] sm:$0xff]
    %v813 = vld [vmem:[#allocation11 + $0x1d8] sm:$0xff]
    %v814 = vld [vmem:[#allocation11 + $0x1e0] sm:$0xff]
    %v815 = vld [vmem:[#allocation11 + $0x1e8] sm:$0xff]
    %v816 = vld [vmem:[#allocation11 + $0x1f0] sm:$0xff]
    %v817 = vld [vmem:[#allocation11 + $0x1f8] sm:$0xff]
    %v818 = vld [vmem:[#allocation11 + $0x200] sm:$0xff]
    %v819 = vld [vmem:[#allocation11 + $0x208] sm:$0xff]
    %v820 = vld [vmem:[#allocation11 + $0x210] sm:$0xff]
    %v821 = vld [vmem:[#allocation11 + $0x218] sm:$0xff]
    %v822 = vld [vmem:[#allocation11 + $0x220] sm:$0xff]
    %v823 = vld [vmem:[#allocation11 + $0x228] sm:$0xff]
    %v824 = vld [vmem:[#allocation11 + $0x230] sm:$0xff]
    %v825 = vld [vmem:[#allocation11 + $0x238] sm:$0xff]
    %v826 = vld [vmem:[#allocation11 + $0x240] sm:$0xff]
    %v827 = vld [vmem:[#allocation11 + $0x248] sm:$0xff]
    %v828 = vld [vmem:[#allocation11 + $0x250] sm:$0xff]
    %v829 = vld [vmem:[#allocation11 + $0x258] sm:$0xff]
    %v830 = vld [vmem:[#allocation11 + $0x260] sm:$0xff]
    %v831 = vld [vmem:[#allocation11 + $0x268] sm:$0xff]
    %v832 = vld [vmem:[#allocation11 + $0x270] sm:$0xff]
    %v833 = vld [vmem:[#allocation11 + $0x278] sm:$0xff]
    %v834 = vld [vmem:[#allocation11 + $0x280] sm:$0xff]
    %v835 = vld [vmem:[#allocation11 + $0x288] sm:$0xff]
    %v836 = vld [vmem:[#allocation11 + $0x290] sm:$0xff]
    %v837 = vld [vmem:[#allocation11 + $0x298] sm:$0xff]
    %v838 = vld [vmem:[#allocation11 + $0x2a0] sm:$0xff]
    %v839 = vld [vmem:[#allocation11 + $0x2a8] sm:$0xff]
    %v840 = vld [vmem:[#allocation11 + $0x2b0] sm:$0xff]
    %v841 = vld [vmem:[#allocation11 + $0x2b8] sm:$0xff]
    %v842 = vld [vmem:[#allocation11 + $0x2c0] sm:$0xff]
    %v843 = vld [vmem:[#allocation11 + $0x2c8] sm:$0xff]
    %v844 = vld [vmem:[#allocation11 + $0x2d0] sm:$0xff]
    %v845 = vld [vmem:[#allocation11 + $0x2d8] sm:$0xff]
    %v846 = vld [vmem:[#allocation11 + $0x2e0] sm:$0xff]
    %v847 = vld [vmem:[#allocation11 + $0x2e8] sm:$0xff]
    %v848 = vld [vmem:[#allocation11 + $0x2f0] sm:$0xff]
    %v849 = vld [vmem:[#allocation11 + $0x2f8] sm:$0xff]
    %v850 = vld [vmem:[#allocation11 + $0x300] sm:$0xff]
    %v851 = vld [vmem:[#allocation11 + $0x308] sm:$0xff]
    %v852 = vld [vmem:[#allocation11 + $0x310] sm:$0xff]
    %v853 = vld [vmem:[#allocation11 + $0x318] sm:$0xff]
    %v854 = vld [vmem:[#allocation11 + $0x320] sm:$0xff]
    %v855 = vld [vmem:[#allocation11 + $0x328] sm:$0xff]
    %v856 = vld [vmem:[#allocation11 + $0x330] sm:$0xff]
    %v857 = vld [vmem:[#allocation11 + $0x338] sm:$0xff]
    %v858 = vld [vmem:[#allocation11 + $0x340] sm:$0xff]
    %v859 = vld [vmem:[#allocation11 + $0x348] sm:$0xff]
    %v860 = vld [vmem:[#allocation11 + $0x350] sm:$0xff]
    %v861 = vld [vmem:[#allocation11 + $0x358] sm:$0xff]
    %v862 = vld [vmem:[#allocation11 + $0x360] sm:$0xff]
    %v863 = vld [vmem:[#allocation11 + $0x368] sm:$0xff]
    %v864 = vld [vmem:[#allocation11 + $0x370] sm:$0xff]
    %v865 = vld [vmem:[#allocation11 + $0x378] sm:$0xff]
    %v866 = vld [vmem:[#allocation11 + $0x380] sm:$0xff]
    %v867 = vld [vmem:[#allocation11 + $0x388] sm:$0xff]
    %v868 = vld [vmem:[#allocation11 + $0x390] sm:$0xff]
    %v869 = vld [vmem:[#allocation11 + $0x398] sm:$0xff]
    %v870 = vld [vmem:[#allocation11 + $0x3a0] sm:$0xff]
    %v871 = vld [vmem:[#allocation11 + $0x3a8] sm:$0xff]
    %v872 = vld [vmem:[#allocation11 + $0x3b0] sm:$0xff]
    %v873 = vld [vmem:[#allocation11 + $0x3b8] sm:$0xff]
    %v874 = vld [vmem:[#allocation11 + $0x3c0] sm:$0xff]
    %v875 = vld [vmem:[#allocation11 + $0x3c8] sm:$0xff]
    %v876 = vld [vmem:[#allocation11 + $0x3d0] sm:$0xff]
    %v877 = vld [vmem:[#allocation11 + $0x3d8] sm:$0xff]
    %v878 = vld [vmem:[#allocation11 + $0x3e0] sm:$0xff]
    %v879 = vld [vmem:[#allocation11 + $0x3e8] sm:$0xff]
    %v880 = vld [vmem:[#allocation11 + $0x3f0] sm:$0xff]
    %v881 = vld [vmem:[#allocation11 + $0x3f8] sm:$0xff]
    %v882 = vld [vmem:[%s9] sm:$0xf]
    %v884 = vperm.slane %v882, 0
    %v885 = vperm.slane %v882, 1
    %v886 = vperm.slane %v882, 2
    %v887 = vperm.slane %v882, 3
    %v1020 = vunpack.c.l.b16 %v754
    %v1021 = vunpack.c.h.b16 %v754
    %v1022 = vunpack.c.l.b16 %v755
    %v1023 = vunpack.c.h.b16 %v755
    %v1024 = vunpack.c.l.b16 %v756
    %v1025 = vunpack.c.h.b16 %v756
    %v1026 = vunpack.c.l.b16 %v757
    %v1027 = vunpack.c.h.b16 %v757
    %v1028 = vunpack.c.l.b16 %v758
    %v1029 = vunpack.c.h.b16 %v758
    %v1030 = vunpack.c.l.b16 %v759
    %v1031 = vunpack.c.h.b16 %v759
    %v1032 = vunpack.c.l.b16 %v760
    %v1033 = vunpack.c.h.b16 %v760
    %v1034 = vunpack.c.l.b16 %v761
    %v1035 = vunpack.c.h.b16 %v761
    %v1036 = vunpack.c.l.b16 %v762
    %v1037 = vunpack.c.h.b16 %v762
    %v1038 = vunpack.c.l.b16 %v763
    %v1039 = vunpack.c.h.b16 %v763
    %v1040 = vunpack.c.l.b16 %v764
    %v1041 = vunpack.c.h.b16 %v764
    %v1042 = vunpack.c.l.b16 %v765
    %v1043 = vunpack.c.h.b16 %v765
    %v1044 = vunpack.c.l.b16 %v766
    %v1045 = vunpack.c.h.b16 %v766
    %v1046 = vunpack.c.l.b16 %v767
    %v1047 = vunpack.c.h.b16 %v767
    %v1048 = vunpack.c.l.b16 %v768
    %v1049 = vunpack.c.h.b16 %v768
    %v1050 = vunpack.c.l.b16 %v769
    %v1051 = vunpack.c.h.b16 %v769
    %v1052 = vunpack.c.l.b16 %v770
    %v1053 = vunpack.c.h.b16 %v770
    %v1054 = vunpack.c.l.b16 %v771
    %v1055 = vunpack.c.h.b16 %v771
    %v1056 = vunpack.c.l.b16 %v772
    %v1057 = vunpack.c.h.b16 %v772
    %v1058 = vunpack.c.l.b16 %v773
    %v1059 = vunpack.c.h.b16 %v773
    %v1060 = vunpack.c.l.b16 %v774
    %v1061 = vunpack.c.h.b16 %v774
    %v1062 = vunpack.c.l.b16 %v775
    %v1063 = vunpack.c.h.b16 %v775
    %v1064 = vunpack.c.l.b16 %v776
    %v1065 = vunpack.c.h.b16 %v776
    %v1066 = vunpack.c.l.b16 %v777
    %v1067 = vunpack.c.h.b16 %v777
    %v1068 = vunpack.c.l.b16 %v778
    %v1069 = vunpack.c.h.b16 %v778
    %v1070 = vunpack.c.l.b16 %v779
    %v1071 = vunpack.c.h.b16 %v779
    %v1072 = vunpack.c.l.b16 %v780
    %v1073 = vunpack.c.h.b16 %v780
    %v1074 = vunpack.c.l.b16 %v781
    %v1075 = vunpack.c.h.b16 %v781
    %v1076 = vunpack.c.l.b16 %v782
    %v1077 = vunpack.c.h.b16 %v782
    %v1078 = vunpack.c.l.b16 %v783
    %v1079 = vunpack.c.h.b16 %v783
    %v1080 = vunpack.c.l.b16 %v784
    %v1081 = vunpack.c.h.b16 %v784
    %v1082 = vunpack.c.l.b16 %v785
    %v1083 = vunpack.c.h.b16 %v785
    %v1084 = vunpack.c.l.b16 %v786
    %v1085 = vunpack.c.h.b16 %v786
    %v1086 = vunpack.c.l.b16 %v787
    %v1087 = vunpack.c.h.b16 %v787
    %v1088 = vunpack.c.l.b16 %v788
    %v1089 = vunpack.c.h.b16 %v788
    %v1090 = vunpack.c.l.b16 %v789
    %v1091 = vunpack.c.h.b16 %v789
    %v1092 = vunpack.c.l.b16 %v790
    %v1093 = vunpack.c.h.b16 %v790
    %v1094 = vunpack.c.l.b16 %v791
    %v1095 = vunpack.c.h.b16 %v791
    %v1096 = vunpack.c.l.b16 %v792
    %v1097 = vunpack.c.h.b16 %v792
    %v1098 = vunpack.c.l.b16 %v793
    %v1099 = vunpack.c.h.b16 %v793
    %v1100 = vunpack.c.l.b16 %v794
    %v1101 = vunpack.c.h.b16 %v794
    %v1102 = vunpack.c.l.b16 %v795
    %v1103 = vunpack.c.h.b16 %v795
    %v1104 = vunpack.c.l.b16 %v796
    %v1105 = vunpack.c.h.b16 %v796
    %v1106 = vunpack.c.l.b16 %v797
    %v1107 = vunpack.c.h.b16 %v797
    %v1108 = vunpack.c.l.b16 %v798
    %v1109 = vunpack.c.h.b16 %v798
    %v1110 = vunpack.c.l.b16 %v799
    %v1111 = vunpack.c.h.b16 %v799
    %v1112 = vunpack.c.l.b16 %v800
    %v1113 = vunpack.c.h.b16 %v800
    %v1114 = vunpack.c.l.b16 %v801
    %v1115 = vunpack.c.h.b16 %v801
    %v1116 = vunpack.c.l.b16 %v802
    %v1117 = vunpack.c.h.b16 %v802
    %v1118 = vunpack.c.l.b16 %v803
    %v1119 = vunpack.c.h.b16 %v803
    %v1120 = vunpack.c.l.b16 %v804
    %v1121 = vunpack.c.h.b16 %v804
    %v1122 = vunpack.c.l.b16 %v805
    %v1123 = vunpack.c.h.b16 %v805
    %v1124 = vunpack.c.l.b16 %v806
    %v1125 = vunpack.c.h.b16 %v806
    %v1126 = vunpack.c.l.b16 %v807
    %v1127 = vunpack.c.h.b16 %v807
    %v1128 = vunpack.c.l.b16 %v808
    %v1129 = vunpack.c.h.b16 %v808
    %v1130 = vunpack.c.l.b16 %v809
    %v1131 = vunpack.c.h.b16 %v809
    %v1132 = vunpack.c.l.b16 %v810
    %v1133 = vunpack.c.h.b16 %v810
    %v1134 = vunpack.c.l.b16 %v811
    %v1135 = vunpack.c.h.b16 %v811
    %v1136 = vunpack.c.l.b16 %v812
    %v1137 = vunpack.c.h.b16 %v812
    %v1138 = vunpack.c.l.b16 %v813
    %v1139 = vunpack.c.h.b16 %v813
    %v1140 = vunpack.c.l.b16 %v814
    %v1141 = vunpack.c.h.b16 %v814
    %v1142 = vunpack.c.l.b16 %v815
    %v1143 = vunpack.c.h.b16 %v815
    %v1144 = vunpack.c.l.b16 %v816
    %v1145 = vunpack.c.h.b16 %v816
    %v1146 = vunpack.c.l.b16 %v817
    %v1147 = vunpack.c.h.b16 %v817
    %v1148 = vunpack.c.l.b16 %v818
    %v1149 = vunpack.c.h.b16 %v818
    %v1150 = vunpack.c.l.b16 %v819
    %v1151 = vunpack.c.h.b16 %v819
    %v1152 = vunpack.c.l.b16 %v820
    %v1153 = vunpack.c.h.b16 %v820
    %v1154 = vunpack.c.l.b16 %v821
    %v1155 = vunpack.c.h.b16 %v821
    %v1156 = vunpack.c.l.b16 %v822
    %v1157 = vunpack.c.h.b16 %v822
    %v1158 = vunpack.c.l.b16 %v823
    %v1159 = vunpack.c.h.b16 %v823
    %v1160 = vunpack.c.l.b16 %v824
    %v1161 = vunpack.c.h.b16 %v824
    %v1162 = vunpack.c.l.b16 %v825
    %v1163 = vunpack.c.h.b16 %v825
    %v1164 = vunpack.c.l.b16 %v826
    %v1165 = vunpack.c.h.b16 %v826
    %v1166 = vunpack.c.l.b16 %v827
    %v1167 = vunpack.c.h.b16 %v827
    %v1168 = vunpack.c.l.b16 %v828
    %v1169 = vunpack.c.h.b16 %v828
    %v1170 = vunpack.c.l.b16 %v829
    %v1171 = vunpack.c.h.b16 %v829
    %v1172 = vunpack.c.l.b16 %v830
    %v1173 = vunpack.c.h.b16 %v830
    %v1174 = vunpack.c.l.b16 %v831
    %v1175 = vunpack.c.h.b16 %v831
    %v1176 = vunpack.c.l.b16 %v832
    %v1177 = vunpack.c.h.b16 %v832
    %v1178 = vunpack.c.l.b16 %v833
    %v1179 = vunpack.c.h.b16 %v833
    %v1180 = vunpack.c.l.b16 %v834
    %v1181 = vunpack.c.h.b16 %v834
    %v1182 = vunpack.c.l.b16 %v835
    %v1183 = vunpack.c.h.b16 %v835
    %v1184 = vunpack.c.l.b16 %v836
    %v1185 = vunpack.c.h.b16 %v836
    %v1186 = vunpack.c.l.b16 %v837
    %v1187 = vunpack.c.h.b16 %v837
    %v1188 = vunpack.c.l.b16 %v838
    %v1189 = vunpack.c.h.b16 %v838
    %v1190 = vunpack.c.l.b16 %v839
    %v1191 = vunpack.c.h.b16 %v839
    %v1192 = vunpack.c.l.b16 %v840
    %v1193 = vunpack.c.h.b16 %v840
    %v1194 = vunpack.c.l.b16 %v841
    %v1195 = vunpack.c.h.b16 %v841
    %v1196 = vunpack.c.l.b16 %v842
    %v1197 = vunpack.c.h.b16 %v842
    %v1198 = vunpack.c.l.b16 %v843
    %v1199 = vunpack.c.h.b16 %v843
    %v1200 = vunpack.c.l.b16 %v844
    %v1201 = vunpack.c.h.b16 %v844
    %v1202 = vunpack.c.l.b16 %v845
    %v1203 = vunpack.c.h.b16 %v845
    %v1204 = vunpack.c.l.b16 %v846
    %v1205 = vunpack.c.h.b16 %v846
    %v1206 = vunpack.c.l.b16 %v847
    %v1207 = vunpack.c.h.b16 %v847
    %v1208 = vunpack.c.l.b16 %v848
    %v1209 = vunpack.c.h.b16 %v848
    %v1210 = vunpack.c.l.b16 %v849
    %v1211 = vunpack.c.h.b16 %v849
    %v1212 = vunpack.c.l.b16 %v850
    %v1213 = vunpack.c.h.b16 %v850
    %v1214 = vunpack.c.l.b16 %v851
    %v1215 = vunpack.c.h.b16 %v851
    %v1216 = vunpack.c.l.b16 %v852
    %v1217 = vunpack.c.h.b16 %v852
    %v1218 = vunpack.c.l.b16 %v853
    %v1219 = vunpack.c.h.b16 %v853
    %v1220 = vunpack.c.l.b16 %v854
    %v1221 = vunpack.c.h.b16 %v854
    %v1222 = vunpack.c.l.b16 %v855
    %v1223 = vunpack.c.h.b16 %v855
    %v1224 = vunpack.c.l.b16 %v856
    %v1225 = vunpack.c.h.b16 %v856
    %v1226 = vunpack.c.l.b16 %v857
    %v1227 = vunpack.c.h.b16 %v857
    %v1228 = vunpack.c.l.b16 %v858
    %v1229 = vunpack.c.h.b16 %v858
    %v1230 = vunpack.c.l.b16 %v859
    %v1231 = vunpack.c.h.b16 %v859
    %v1232 = vunpack.c.l.b16 %v860
    %v1233 = vunpack.c.h.b16 %v860
    %v1234 = vunpack.c.l.b16 %v861
    %v1235 = vunpack.c.h.b16 %v861
    %v1236 = vunpack.c.l.b16 %v862
    %v1237 = vunpack.c.h.b16 %v862
    %v1238 = vunpack.c.l.b16 %v863
    %v1239 = vunpack.c.h.b16 %v863
    %v1240 = vunpack.c.l.b16 %v864
    %v1241 = vunpack.c.h.b16 %v864
    %v1242 = vunpack.c.l.b16 %v865
    %v1243 = vunpack.c.h.b16 %v865
    %v1244 = vunpack.c.l.b16 %v866
    %v1245 = vunpack.c.h.b16 %v866
    %v1246 = vunpack.c.l.b16 %v867
    %v1247 = vunpack.c.h.b16 %v867
    %v1248 = vunpack.c.l.b16 %v868
    %v1249 = vunpack.c.h.b16 %v868
    %v1250 = vunpack.c.l.b16 %v869
    %v1251 = vunpack.c.h.b16 %v869
    %v1252 = vunpack.c.l.b16 %v870
    %v1253 = vunpack.c.h.b16 %v870
    %v1254 = vunpack.c.l.b16 %v871
    %v1255 = vunpack.c.h.b16 %v871
    %v1256 = vunpack.c.l.b16 %v872
    %v1257 = vunpack.c.h.b16 %v872
    %v1258 = vunpack.c.l.b16 %v873
    %v1259 = vunpack.c.h.b16 %v873
    %v1260 = vunpack.c.l.b16 %v874
    %v1261 = vunpack.c.h.b16 %v874
    %v1262 = vunpack.c.l.b16 %v875
    %v1263 = vunpack.c.h.b16 %v875
    %v1264 = vunpack.c.l.b16 %v876
    %v1265 = vunpack.c.h.b16 %v876
    %v1266 = vunpack.c.l.b16 %v877
    %v1267 = vunpack.c.h.b16 %v877
    %v1268 = vunpack.c.l.b16 %v878
    %v1269 = vunpack.c.h.b16 %v878
    %v1270 = vunpack.c.l.b16 %v879
    %v1271 = vunpack.c.h.b16 %v879
    %v1272 = vunpack.c.l.b16 %v880
    %v1273 = vunpack.c.h.b16 %v880
    %v1274 = vunpack.c.l.b16 %v881
    %v1275 = vunpack.c.h.b16 %v881
    %v1276 = vpack.c.b16 %v1024, %v1020
    %v1277 = vpack.c.b16 %v1025, %v1021
    %v1278 = vpack.c.b16 %v1026, %v1022
    %v1279 = vpack.c.b16 %v1027, %v1023
    %v1280 = vpack.c.b16 %v1032, %v1028
    %v1281 = vpack.c.b16 %v1033, %v1029
    %v1282 = vpack.c.b16 %v1034, %v1030
    %v1283 = vpack.c.b16 %v1035, %v1031
    %v1284 = vpack.c.b16 %v1040, %v1036
    %v1285 = vpack.c.b16 %v1041, %v1037
    %v1286 = vpack.c.b16 %v1042, %v1038
    %v1287 = vpack.c.b16 %v1043, %v1039
    %v1288 = vpack.c.b16 %v1048, %v1044
    %v1289 = vpack.c.b16 %v1049, %v1045
    %v1290 = vpack.c.b16 %v1050, %v1046
    %v1291 = vpack.c.b16 %v1051, %v1047
    %v1292 = vpack.c.b16 %v1056, %v1052
    %v1293 = vpack.c.b16 %v1057, %v1053
    %v1294 = vpack.c.b16 %v1058, %v1054
    %v1295 = vpack.c.b16 %v1059, %v1055
    %v1296 = vpack.c.b16 %v1064, %v1060
    %v1297 = vpack.c.b16 %v1065, %v1061
    %v1298 = vpack.c.b16 %v1066, %v1062
    %v1299 = vpack.c.b16 %v1067, %v1063
    %v1300 = vpack.c.b16 %v1072, %v1068
    %v1301 = vpack.c.b16 %v1073, %v1069
    %v1302 = vpack.c.b16 %v1074, %v1070
    %v1303 = vpack.c.b16 %v1075, %v1071
    %v1304 = vpack.c.b16 %v1080, %v1076
    %v1305 = vpack.c.b16 %v1081, %v1077
    %v1306 = vpack.c.b16 %v1082, %v1078
    %v1307 = vpack.c.b16 %v1083, %v1079
    %v1308 = vpack.c.b16 %v1088, %v1084
    %v1309 = vpack.c.b16 %v1089, %v1085
    %v1310 = vpack.c.b16 %v1090, %v1086
    %v1311 = vpack.c.b16 %v1091, %v1087
    %v1312 = vpack.c.b16 %v1096, %v1092
    %v1313 = vpack.c.b16 %v1097, %v1093
    %v1314 = vpack.c.b16 %v1098, %v1094
    %v1315 = vpack.c.b16 %v1099, %v1095
    %v1316 = vpack.c.b16 %v1104, %v1100
    %v1317 = vpack.c.b16 %v1105, %v1101
    %v1318 = vpack.c.b16 %v1106, %v1102
    %v1319 = vpack.c.b16 %v1107, %v1103
    %v1320 = vpack.c.b16 %v1112, %v1108
    %v1321 = vpack.c.b16 %v1113, %v1109
    %v1322 = vpack.c.b16 %v1114, %v1110
    %v1323 = vpack.c.b16 %v1115, %v1111
    %v1324 = vpack.c.b16 %v1120, %v1116
    %v1325 = vpack.c.b16 %v1121, %v1117
    %v1326 = vpack.c.b16 %v1122, %v1118
    %v1327 = vpack.c.b16 %v1123, %v1119
    %v1328 = vpack.c.b16 %v1128, %v1124
    %v1329 = vpack.c.b16 %v1129, %v1125
    %v1330 = vpack.c.b16 %v1130, %v1126
    %v1331 = vpack.c.b16 %v1131, %v1127
    %v1332 = vpack.c.b16 %v1136, %v1132
    %v1333 = vpack.c.b16 %v1137, %v1133
    %v1334 = vpack.c.b16 %v1138, %v1134
    %v1335 = vpack.c.b16 %v1139, %v1135
    %v1336 = vpack.c.b16 %v1144, %v1140
    %v1337 = vpack.c.b16 %v1145, %v1141
    %v1338 = vpack.c.b16 %v1146, %v1142
    %v1339 = vpack.c.b16 %v1147, %v1143
    %v1340 = vpack.c.b16 %v1152, %v1148
    %v1341 = vpack.c.b16 %v1153, %v1149
    %v1342 = vpack.c.b16 %v1154, %v1150
    %v1343 = vpack.c.b16 %v1155, %v1151
    %v1344 = vpack.c.b16 %v1160, %v1156
    %v1345 = vpack.c.b16 %v1161, %v1157
    %v1346 = vpack.c.b16 %v1162, %v1158
    %v1347 = vpack.c.b16 %v1163, %v1159
    %v1348 = vpack.c.b16 %v1168, %v1164
    %v1349 = vpack.c.b16 %v1169, %v1165
    %v1350 = vpack.c.b16 %v1170, %v1166
    %v1351 = vpack.c.b16 %v1171, %v1167
    %v1352 = vpack.c.b16 %v1176, %v1172
    %v1353 = vpack.c.b16 %v1177, %v1173
    %v1354 = vpack.c.b16 %v1178, %v1174
    %v1355 = vpack.c.b16 %v1179, %v1175
    %v1356 = vpack.c.b16 %v1184, %v1180
    %v1357 = vpack.c.b16 %v1185, %v1181
    %v1358 = vpack.c.b16 %v1186, %v1182
    %v1359 = vpack.c.b16 %v1187, %v1183
    %v1360 = vpack.c.b16 %v1192, %v1188
    %v1361 = vpack.c.b16 %v1193, %v1189
    %v1362 = vpack.c.b16 %v1194, %v1190
    %v1363 = vpack.c.b16 %v1195, %v1191
    %v1364 = vpack.c.b16 %v1200, %v1196
    %v1365 = vpack.c.b16 %v1201, %v1197
    %v1366 = vpack.c.b16 %v1202, %v1198
    %v1367 = vpack.c.b16 %v1203, %v1199
    %v1368 = vpack.c.b16 %v1208, %v1204
    %v1369 = vpack.c.b16 %v1209, %v1205
    %v1370 = vpack.c.b16 %v1210, %v1206
    %v1371 = vpack.c.b16 %v1211, %v1207
    %v1372 = vpack.c.b16 %v1216, %v1212
    %v1373 = vpack.c.b16 %v1217, %v1213
    %v1374 = vpack.c.b16 %v1218, %v1214
    %v1375 = vpack.c.b16 %v1219, %v1215
    %v1376 = vpack.c.b16 %v1224, %v1220
    %v1377 = vpack.c.b16 %v1225, %v1221
    %v1378 = vpack.c.b16 %v1226, %v1222
    %v1379 = vpack.c.b16 %v1227, %v1223
    %v1380 = vpack.c.b16 %v1232, %v1228
    %v1381 = vpack.c.b16 %v1233, %v1229
    %v1382 = vpack.c.b16 %v1234, %v1230
    %v1383 = vpack.c.b16 %v1235, %v1231
    %v1384 = vpack.c.b16 %v1240, %v1236
    %v1385 = vpack.c.b16 %v1241, %v1237
    %v1386 = vpack.c.b16 %v1242, %v1238
    %v1387 = vpack.c.b16 %v1243, %v1239
    %v1388 = vpack.c.b16 %v1248, %v1244
    %v1389 = vpack.c.b16 %v1249, %v1245
    %v1390 = vpack.c.b16 %v1250, %v1246
    %v1391 = vpack.c.b16 %v1251, %v1247
    %v1392 = vpack.c.b16 %v1256, %v1252
    %v1393 = vpack.c.b16 %v1257, %v1253
    %v1394 = vpack.c.b16 %v1258, %v1254
    %v1395 = vpack.c.b16 %v1259, %v1255
    %v1396 = vpack.c.b16 %v1264, %v1260
    %v1397 = vpack.c.b16 %v1265, %v1261
    %v1398 = vpack.c.b16 %v1266, %v1262
    %v1399 = vpack.c.b16 %v1267, %v1263
    %v1400 = vpack.c.b16 %v1272, %v1268
    %v1401 = vpack.c.b16 %v1273, %v1269
    %v1402 = vpack.c.b16 %v1274, %v1270
    %v1403 = vpack.c.b16 %v1275, %v1271
    %1532 = vmatpush.bf16.msra.mxu0 %v1304
    %1533 = vmatpush.bf16.msra.mxu0 %v1300
    %1534 = vmatpush.bf16.msra.mxu0 %v1296
    %1535 = vmatpush.bf16.msra.mxu0 %v1292
    %1536 = vmatpush.bf16.msra.mxu0 %v1288
    %1537 = vmatpush.bf16.msra.mxu0 %v1284
    %1538 = vmatpush.bf16.msra.mxu0 %v1280
    %1539 = vmatpush.bf16.msra.mxu0 %v1276
    %1540 = vmatmul.bf16.gmra.mxu0 %v750
    %v1541 = vpop.f32.mrf.mxu0
    %v1542 = vadd.f32 %v884, %v1541
    %v1543 = vpop.f32.mrf.mxu0
    %1544 = vdwg.mxu0
    %1545 = vmatpush.bf16.msra.mxu0 %v1336
    %1546 = vmatpush.bf16.msra.mxu0 %v1332
    %1547 = vmatpush.bf16.msra.mxu0 %v1328
    %1548 = vmatpush.bf16.msra.mxu0 %v1324
    %1549 = vmatpush.bf16.msra.mxu0 %v1320
    %1550 = vmatpush.bf16.msra.mxu0 %v1316
    %1551 = vmatpush.bf16.msra.mxu0 %v1312
    %1552 = vmatpush.bf16.msra.mxu0 %v1308
    %1553 = vmatmul.bf16.gmra.mxu0 %v751
    %v1554 = vpop.f32.mrf.mxu0
    %v1555 = vadd.f32 %v1542, %v1554
    %v1556 = vpop.f32.mrf.mxu0
    %1557 = vdwg.mxu0
    %1558 = vmatpush.bf16.msra.mxu0 %v1368
    %1559 = vmatpush.bf16.msra.mxu0 %v1364
    %1560 = vmatpush.bf16.msra.mxu0 %v1360
    %1561 = vmatpush.bf16.msra.mxu0 %v1356
    %1562 = vmatpush.bf16.msra.mxu0 %v1352
    %1563 = vmatpush.bf16.msra.mxu0 %v1348
    %1564 = vmatpush.bf16.msra.mxu0 %v1344
    %1565 = vmatpush.bf16.msra.mxu0 %v1340
    %1566 = vmatmul.bf16.gmra.mxu0 %v752
    %v1567 = vpop.f32.mrf.mxu0
    %v1568 = vadd.f32 %v1555, %v1567
    %v1569 = vpop.f32.mrf.mxu0
    %1570 = vdwg.mxu0
    %1571 = vmatpush.bf16.msra.mxu0 %v1400
    %1572 = vmatpush.bf16.msra.mxu0 %v1396
    %1573 = vmatpush.bf16.msra.mxu0 %v1392
    %1574 = vmatpush.bf16.msra.mxu0 %v1388
    %1575 = vmatpush.bf16.msra.mxu0 %v1384
    %1576 = vmatpush.bf16.msra.mxu0 %v1380
    %1577 = vmatpush.bf16.msra.mxu0 %v1376
    %1578 = vmatpush.bf16.msra.mxu0 %v1372
    %1579 = vmatmul.bf16.gmra.mxu0 %v753
    %v1580 = vpop.f32.mrf.mxu0
    %v1581 = vadd.f32 %v1568, %v1580
    %v1582 = vpop.f32.mrf.mxu0
    %1583 = vdwg.mxu0
    %1584 = vmatpush.bf16.msra.mxu0 %v1305
    %1585 = vmatpush.bf16.msra.mxu0 %v1301
    %1586 = vmatpush.bf16.msra.mxu0 %v1297
    %1587 = vmatpush.bf16.msra.mxu0 %v1293
    %1588 = vmatpush.bf16.msra.mxu0 %v1289
    %1589 = vmatpush.bf16.msra.mxu0 %v1285
    %1590 = vmatpush.bf16.msra.mxu0 %v1281
    %1591 = vmatpush.bf16.msra.mxu0 %v1277
    %1592 = vmatmul.bf16.gmra.mxu0 %v750
    %v1593 = vpop.f32.mrf.mxu0
    %v1594 = vadd.f32 %v885, %v1593
    %v1595 = vpop.f32.mrf.mxu0
    %1596 = vdwg.mxu0
    %1597 = vmatpush.bf16.msra.mxu0 %v1337
    %1598 = vmatpush.bf16.msra.mxu0 %v1333
    %1599 = vmatpush.bf16.msra.mxu0 %v1329
    %1600 = vmatpush.bf16.msra.mxu0 %v1325
    %1601 = vmatpush.bf16.msra.mxu0 %v1321
    %1602 = vmatpush.bf16.msra.mxu0 %v1317
    %1603 = vmatpush.bf16.msra.mxu0 %v1313
    %1604 = vmatpush.bf16.msra.mxu0 %v1309
    %1605 = vmatmul.bf16.gmra.mxu0 %v751
    %v1606 = vpop.f32.mrf.mxu0
    %v1607 = vadd.f32 %v1594, %v1606
    %v1608 = vpop.f32.mrf.mxu0
    %1609 = vdwg.mxu0
    %1610 = vmatpush.bf16.msra.mxu0 %v1369
    %1611 = vmatpush.bf16.msra.mxu0 %v1365
    %1612 = vmatpush.bf16.msra.mxu0 %v1361
    %1613 = vmatpush.bf16.msra.mxu0 %v1357
    %1614 = vmatpush.bf16.msra.mxu0 %v1353
    %1615 = vmatpush.bf16.msra.mxu0 %v1349
    %1616 = vmatpush.bf16.msra.mxu0 %v1345
    %1617 = vmatpush.bf16.msra.mxu0 %v1341
    %1618 = vmatmul.bf16.gmra.mxu0 %v752
    %v1619 = vpop.f32.mrf.mxu0
    %v1620 = vadd.f32 %v1607, %v1619
    %v1621 = vpop.f32.mrf.mxu0
    %1622 = vdwg.mxu0
    %1623 = vmatpush.bf16.msra.mxu0 %v1401
    %1624 = vmatpush.bf16.msra.mxu0 %v1397
    %1625 = vmatpush.bf16.msra.mxu0 %v1393
    %1626 = vmatpush.bf16.msra.mxu0 %v1389
    %1627 = vmatpush.bf16.msra.mxu0 %v1385
    %1628 = vmatpush.bf16.msra.mxu0 %v1381
    %1629 = vmatpush.bf16.msra.mxu0 %v1377
    %1630 = vmatpush.bf16.msra.mxu0 %v1373
    %1631 = vmatmul.bf16.gmra.mxu0 %v753
    %v1632 = vpop.f32.mrf.mxu0
    %v1633 = vadd.f32 %v1620, %v1632
    %v1634 = vpop.f32.mrf.mxu0
    %1635 = vdwg.mxu0
    %1636 = vmatpush.bf16.msra.mxu0 %v1306
    %1637 = vmatpush.bf16.msra.mxu0 %v1302
    %1638 = vmatpush.bf16.msra.mxu0 %v1298
    %1639 = vmatpush.bf16.msra.mxu0 %v1294
    %1640 = vmatpush.bf16.msra.mxu0 %v1290
    %1641 = vmatpush.bf16.msra.mxu0 %v1286
    %1642 = vmatpush.bf16.msra.mxu0 %v1282
    %1643 = vmatpush.bf16.msra.mxu0 %v1278
    %1644 = vmatmul.bf16.gmra.mxu0 %v750
    %v1645 = vpop.f32.mrf.mxu0
    %v1646 = vadd.f32 %v886, %v1645
    %v1647 = vpop.f32.mrf.mxu0
    %1648 = vdwg.mxu0
    %1649 = vmatpush.bf16.msra.mxu0 %v1338
    %1650 = vmatpush.bf16.msra.mxu0 %v1334
    %1651 = vmatpush.bf16.msra.mxu0 %v1330
    %1652 = vmatpush.bf16.msra.mxu0 %v1326
    %1653 = vmatpush.bf16.msra.mxu0 %v1322
    %1654 = vmatpush.bf16.msra.mxu0 %v1318
    %1655 = vmatpush.bf16.msra.mxu0 %v1314
    %1656 = vmatpush.bf16.msra.mxu0 %v1310
    %1657 = vmatmul.bf16.gmra.mxu0 %v751
    %v1658 = vpop.f32.mrf.mxu0
    %v1659 = vadd.f32 %v1646, %v1658
    %v1660 = vpop.f32.mrf.mxu0
    %1661 = vdwg.mxu0
    %1662 = vmatpush.bf16.msra.mxu0 %v1370
    %1663 = vmatpush.bf16.msra.mxu0 %v1366
    %1664 = vmatpush.bf16.msra.mxu0 %v1362
    %1665 = vmatpush.bf16.msra.mxu0 %v1358
    %1666 = vmatpush.bf16.msra.mxu0 %v1354
    %1667 = vmatpush.bf16.msra.mxu0 %v1350
    %1668 = vmatpush.bf16.msra.mxu0 %v1346
    %1669 = vmatpush.bf16.msra.mxu0 %v1342
    %1670 = vmatmul.bf16.gmra.mxu0 %v752
    %v1671 = vpop.f32.mrf.mxu0
    %v1672 = vadd.f32 %v1659, %v1671
    %v1673 = vpop.f32.mrf.mxu0
    %1674 = vdwg.mxu0
    %1675 = vmatpush.bf16.msra.mxu0 %v1402
    %1676 = vmatpush.bf16.msra.mxu0 %v1398
    %1677 = vmatpush.bf16.msra.mxu0 %v1394
    %1678 = vmatpush.bf16.msra.mxu0 %v1390
    %1679 = vmatpush.bf16.msra.mxu0 %v1386
    %1680 = vmatpush.bf16.msra.mxu0 %v1382
    %1681 = vmatpush.bf16.msra.mxu0 %v1378
    %1682 = vmatpush.bf16.msra.mxu0 %v1374
    %1683 = vmatmul.bf16.gmra.mxu0 %v753
    %v1684 = vpop.f32.mrf.mxu0
    %v1685 = vadd.f32 %v1672, %v1684
    %v1686 = vpop.f32.mrf.mxu0
    %1687 = vdwg.mxu0
    %1688 = vmatpush.bf16.msra.mxu0 %v1307
    %1689 = vmatpush.bf16.msra.mxu0 %v1303
    %1690 = vmatpush.bf16.msra.mxu0 %v1299
    %1691 = vmatpush.bf16.msra.mxu0 %v1295
    %1692 = vmatpush.bf16.msra.mxu0 %v1291
    %1693 = vmatpush.bf16.msra.mxu0 %v1287
    %1694 = vmatpush.bf16.msra.mxu0 %v1283
    %1695 = vmatpush.bf16.msra.mxu0 %v1279
    %1696 = vmatmul.bf16.gmra.mxu0 %v750
    %v1697 = vpop.f32.mrf.mxu0
    %v1698 = vadd.f32 %v887, %v1697
    %v1699 = vpop.f32.mrf.mxu0
    %1700 = vdwg.mxu0
    %1701 = vmatpush.bf16.msra.mxu0 %v1339
    %1702 = vmatpush.bf16.msra.mxu0 %v1335
    %1703 = vmatpush.bf16.msra.mxu0 %v1331
    %1704 = vmatpush.bf16.msra.mxu0 %v1327
    %1705 = vmatpush.bf16.msra.mxu0 %v1323
    %1706 = vmatpush.bf16.msra.mxu0 %v1319
    %1707 = vmatpush.bf16.msra.mxu0 %v1315
    %1708 = vmatpush.bf16.msra.mxu0 %v1311
    %1709 = vmatmul.bf16.gmra.mxu0 %v751
    %v1710 = vpop.f32.mrf.mxu0
    %v1711 = vadd.f32 %v1698, %v1710
    %v1712 = vpop.f32.mrf.mxu0
    %1713 = vdwg.mxu0
    %1714 = vmatpush.bf16.msra.mxu0 %v1371
    %1715 = vmatpush.bf16.msra.mxu0 %v1367
    %1716 = vmatpush.bf16.msra.mxu0 %v1363
    %1717 = vmatpush.bf16.msra.mxu0 %v1359
    %1718 = vmatpush.bf16.msra.mxu0 %v1355
    %1719 = vmatpush.bf16.msra.mxu0 %v1351
    %1720 = vmatpush.bf16.msra.mxu0 %v1347
    %1721 = vmatpush.bf16.msra.mxu0 %v1343
    %1722 = vmatmul.bf16.gmra.mxu0 %v752
    %v1723 = vpop.f32.mrf.mxu0
    %v1724 = vadd.f32 %v1711, %v1723
    %v1725 = vpop.f32.mrf.mxu0
    %1726 = vdwg.mxu0
    %1727 = vmatpush.bf16.msra.mxu0 %v1403
    %1728 = vmatpush.bf16.msra.mxu0 %v1399
    %1729 = vmatpush.bf16.msra.mxu0 %v1395
    %1730 = vmatpush.bf16.msra.mxu0 %v1391
    %1731 = vmatpush.bf16.msra.mxu0 %v1387
    %1732 = vmatpush.bf16.msra.mxu0 %v1383
    %1733 = vmatpush.bf16.msra.mxu0 %v1379
    %1734 = vmatpush.bf16.msra.mxu0 %v1375
    %1735 = vmatmul.bf16.gmra.mxu0 %v753
    %v1736 = vpop.f32.mrf.mxu0
    %v1737 = vadd.f32 %v1724, %v1736
    %v1738 = vpop.f32.mrf.mxu0
    %1739 = vdwg.mxu0
    %vm1740 = vcmp.gt.f32.partialorder %v1581, 0.0
    %vm1741 = vcmp.gt.f32.partialorder %v1633, 0.0
    %vm1742 = vcmp.gt.f32.partialorder %v1685, 0.0
    %vm1743 = vcmp.gt.f32.partialorder %v1737, 0.0
    %v1744 = vmul.f32 %v1581, 0.01
    %v1745 = vmul.f32 %v1633, 0.01
    %v1746 = vmul.f32 %v1685, 0.01
    %v1747 = vmul.f32 %v1737, 0.01
    %v1748 = vsel %vm1740, %v1581, %v1744
    %v1749 = vsel %vm1741, %v1633, %v1745
    %v1750 = vsel %vm1742, %v1685, %v1746
    %v1751 = vsel %vm1743, %v1737, %v1747
    %v1752 = vpack.c.bf16 %v1748, %v1748
    %v1753 = vpack.c.bf16 %v1749, %v1749
    %v1754 = vpack.c.bf16 %v1750, %v1750
    %v1755 = vpack.c.bf16 %v1751, %v1751
    %v1756 = vld [vmem:[#allocation13] sm:$0xf]
    %v1757 = vld [vmem:[#allocation13 + $0x4] sm:$0xf]
    %v1758 = vld [vmem:[#allocation13 + $0x8] sm:$0xf]
    %v1759 = vld [vmem:[#allocation13 + $0xc] sm:$0xf]
    %v1760 = vld [vmem:[#allocation13 + $0x10] sm:$0xf]
    %v1761 = vld [vmem:[#allocation13 + $0x14] sm:$0xf]
    %v1762 = vld [vmem:[#allocation13 + $0x18] sm:$0xf]
    %v1763 = vld [vmem:[#allocation13 + $0x1c] sm:$0xf]
    %v1764 = vld [vmem:[#allocation13 + $0x20] sm:$0xf]
    %v1765 = vld [vmem:[#allocation13 + $0x24] sm:$0xf]
    %v1766 = vld [vmem:[#allocation13 + $0x28] sm:$0xf]
    %v1767 = vld [vmem:[#allocation13 + $0x2c] sm:$0xf]
    %v1768 = vld [vmem:[#allocation13 + $0x30] sm:$0xf]
    %v1769 = vld [vmem:[#allocation13 + $0x34] sm:$0xf]
    %v1770 = vld [vmem:[#allocation13 + $0x38] sm:$0xf]
    %v1771 = vld [vmem:[#allocation13 + $0x3c] sm:$0xf]
    %v1772 = vld [vmem:[#allocation13 + $0x40] sm:$0xf]
    %v1773 = vld [vmem:[#allocation13 + $0x44] sm:$0xf]
    %v1774 = vld [vmem:[#allocation13 + $0x48] sm:$0xf]
    %v1775 = vld [vmem:[#allocation13 + $0x4c] sm:$0xf]
    %v1776 = vld [vmem:[#allocation13 + $0x50] sm:$0xf]
    %v1777 = vld [vmem:[#allocation13 + $0x54] sm:$0xf]
    %v1778 = vld [vmem:[#allocation13 + $0x58] sm:$0xf]
    %v1779 = vld [vmem:[#allocation13 + $0x5c] sm:$0xf]
    %v1780 = vld [vmem:[#allocation13 + $0x60] sm:$0xf]
    %v1781 = vld [vmem:[#allocation13 + $0x64] sm:$0xf]
    %v1782 = vld [vmem:[#allocation13 + $0x68] sm:$0xf]
    %v1783 = vld [vmem:[#allocation13 + $0x6c] sm:$0xf]
    %v1784 = vld [vmem:[#allocation13 + $0x70] sm:$0xf]
    %v1785 = vld [vmem:[#allocation13 + $0x74] sm:$0xf]
    %v1786 = vld [vmem:[#allocation13 + $0x78] sm:$0xf]
    %v1787 = vld [vmem:[#allocation13 + $0x7c] sm:$0xf]
    %v1788 = vld [vmem:[#allocation13 + $0x80] sm:$0xf]
    %v1789 = vld [vmem:[#allocation13 + $0x84] sm:$0xf]
    %v1790 = vld [vmem:[#allocation13 + $0x88] sm:$0xf]
    %v1791 = vld [vmem:[#allocation13 + $0x8c] sm:$0xf]
    %v1792 = vld [vmem:[#allocation13 + $0x90] sm:$0xf]
    %v1793 = vld [vmem:[#allocation13 + $0x94] sm:$0xf]
    %v1794 = vld [vmem:[#allocation13 + $0x98] sm:$0xf]
    %v1795 = vld [vmem:[#allocation13 + $0x9c] sm:$0xf]
    %v1796 = vld [vmem:[#allocation13 + $0xa0] sm:$0xf]
    %v1797 = vld [vmem:[#allocation13 + $0xa4] sm:$0xf]
    %v1798 = vld [vmem:[#allocation13 + $0xa8] sm:$0xf]
    %v1799 = vld [vmem:[#allocation13 + $0xac] sm:$0xf]
    %v1800 = vld [vmem:[#allocation13 + $0xb0] sm:$0xf]
    %v1801 = vld [vmem:[#allocation13 + $0xb4] sm:$0xf]
    %v1802 = vld [vmem:[#allocation13 + $0xb8] sm:$0xf]
    %v1803 = vld [vmem:[#allocation13 + $0xbc] sm:$0xf]
    %v1804 = vld [vmem:[#allocation13 + $0xc0] sm:$0xf]
    %v1805 = vld [vmem:[#allocation13 + $0xc4] sm:$0xf]
    %v1806 = vld [vmem:[#allocation13 + $0xc8] sm:$0xf]
    %v1807 = vld [vmem:[#allocation13 + $0xcc] sm:$0xf]
    %v1808 = vld [vmem:[#allocation13 + $0xd0] sm:$0xf]
    %v1809 = vld [vmem:[#allocation13 + $0xd4] sm:$0xf]
    %v1810 = vld [vmem:[#allocation13 + $0xd8] sm:$0xf]
    %v1811 = vld [vmem:[#allocation13 + $0xdc] sm:$0xf]
    %v1812 = vld [vmem:[#allocation13 + $0xe0] sm:$0xf]
    %v1813 = vld [vmem:[#allocation13 + $0xe4] sm:$0xf]
    %v1814 = vld [vmem:[#allocation13 + $0xe8] sm:$0xf]
    %v1815 = vld [vmem:[#allocation13 + $0xec] sm:$0xf]
    %v1816 = vld [vmem:[#allocation13 + $0xf0] sm:$0xf]
    %v1817 = vld [vmem:[#allocation13 + $0xf4] sm:$0xf]
    %v1818 = vld [vmem:[#allocation13 + $0xf8] sm:$0xf]
    %v1819 = vld [vmem:[#allocation13 + $0xfc] sm:$0xf]
    %v1820 = vld [vmem:[%s11] sm:$0x1]
    %v1822 = vperm.slane %v1820, 0
    %v1888 = vunpack.c.l.b16 %v1756
    %v1889 = vunpack.c.l.b16 %v1757
    %v1890 = vunpack.c.l.b16 %v1758
    %v1891 = vunpack.c.l.b16 %v1759
    %v1892 = vunpack.c.l.b16 %v1760
    %v1893 = vunpack.c.l.b16 %v1761
    %v1894 = vunpack.c.l.b16 %v1762
    %v1895 = vunpack.c.l.b16 %v1763
    %v1896 = vunpack.c.l.b16 %v1764
    %v1897 = vunpack.c.l.b16 %v1765
    %v1898 = vunpack.c.l.b16 %v1766
    %v1899 = vunpack.c.l.b16 %v1767
    %v1900 = vunpack.c.l.b16 %v1768
    %v1901 = vunpack.c.l.b16 %v1769
    %v1902 = vunpack.c.l.b16 %v1770
    %v1903 = vunpack.c.l.b16 %v1771
    %v1904 = vunpack.c.l.b16 %v1772
    %v1905 = vunpack.c.l.b16 %v1773
    %v1906 = vunpack.c.l.b16 %v1774
    %v1907 = vunpack.c.l.b16 %v1775
    %v1908 = vunpack.c.l.b16 %v1776
    %v1909 = vunpack.c.l.b16 %v1777
    %v1910 = vunpack.c.l.b16 %v1778
    %v1911 = vunpack.c.l.b16 %v1779
    %v1912 = vunpack.c.l.b16 %v1780
    %v1913 = vunpack.c.l.b16 %v1781
    %v1914 = vunpack.c.l.b16 %v1782
    %v1915 = vunpack.c.l.b16 %v1783
    %v1916 = vunpack.c.l.b16 %v1784
    %v1917 = vunpack.c.l.b16 %v1785
    %v1918 = vunpack.c.l.b16 %v1786
    %v1919 = vunpack.c.l.b16 %v1787
    %v1920 = vunpack.c.l.b16 %v1788
    %v1921 = vunpack.c.l.b16 %v1789
    %v1922 = vunpack.c.l.b16 %v1790
    %v1923 = vunpack.c.l.b16 %v1791
    %v1924 = vunpack.c.l.b16 %v1792
    %v1925 = vunpack.c.l.b16 %v1793
    %v1926 = vunpack.c.l.b16 %v1794
    %v1927 = vunpack.c.l.b16 %v1795
    %v1928 = vunpack.c.l.b16 %v1796
    %v1929 = vunpack.c.l.b16 %v1797
    %v1930 = vunpack.c.l.b16 %v1798
    %v1931 = vunpack.c.l.b16 %v1799
    %v1932 = vunpack.c.l.b16 %v1800
    %v1933 = vunpack.c.l.b16 %v1801
    %v1934 = vunpack.c.l.b16 %v1802
    %v1935 = vunpack.c.l.b16 %v1803
    %v1936 = vunpack.c.l.b16 %v1804
    %v1937 = vunpack.c.l.b16 %v1805
    %v1938 = vunpack.c.l.b16 %v1806
    %v1939 = vunpack.c.l.b16 %v1807
    %v1940 = vunpack.c.l.b16 %v1808
    %v1941 = vunpack.c.l.b16 %v1809
    %v1942 = vunpack.c.l.b16 %v1810
    %v1943 = vunpack.c.l.b16 %v1811
    %v1944 = vunpack.c.l.b16 %v1812
    %v1945 = vunpack.c.l.b16 %v1813
    %v1946 = vunpack.c.l.b16 %v1814
    %v1947 = vunpack.c.l.b16 %v1815
    %v1948 = vunpack.c.l.b16 %v1816
    %v1949 = vunpack.c.l.b16 %v1817
    %v1950 = vunpack.c.l.b16 %v1818
    %v1951 = vunpack.c.l.b16 %v1819
    %v1952 = vpack.c.b16 %v1889, %v1888
    %v1953 = vpack.c.b16 %v1891, %v1890
    %v1954 = vpack.c.b16 %v1893, %v1892
    %v1955 = vpack.c.b16 %v1895, %v1894
    %v1956 = vpack.c.b16 %v1897, %v1896
    %v1957 = vpack.c.b16 %v1899, %v1898
    %v1958 = vpack.c.b16 %v1901, %v1900
    %v1959 = vpack.c.b16 %v1903, %v1902
    %v1960 = vpack.c.b16 %v1905, %v1904
    %v1961 = vpack.c.b16 %v1907, %v1906
    %v1962 = vpack.c.b16 %v1909, %v1908
    %v1963 = vpack.c.b16 %v1911, %v1910
    %v1964 = vpack.c.b16 %v1913, %v1912
    %v1965 = vpack.c.b16 %v1915, %v1914
    %v1966 = vpack.c.b16 %v1917, %v1916
    %v1967 = vpack.c.b16 %v1919, %v1918
    %v1968 = vpack.c.b16 %v1921, %v1920
    %v1969 = vpack.c.b16 %v1923, %v1922
    %v1970 = vpack.c.b16 %v1925, %v1924
    %v1971 = vpack.c.b16 %v1927, %v1926
    %v1972 = vpack.c.b16 %v1929, %v1928
    %v1973 = vpack.c.b16 %v1931, %v1930
    %v1974 = vpack.c.b16 %v1933, %v1932
    %v1975 = vpack.c.b16 %v1935, %v1934
    %v1976 = vpack.c.b16 %v1937, %v1936
    %v1977 = vpack.c.b16 %v1939, %v1938
    %v1978 = vpack.c.b16 %v1941, %v1940
    %v1979 = vpack.c.b16 %v1943, %v1942
    %v1980 = vpack.c.b16 %v1945, %v1944
    %v1981 = vpack.c.b16 %v1947, %v1946
    %v1982 = vpack.c.b16 %v1949, %v1948
    %v1983 = vpack.c.b16 %v1951, %v1950
    %2016 = vmatpush.bf16.msra.mxu0 %v1959
    %2017 = vmatpush.bf16.msra.mxu0 %v1958
    %2018 = vmatpush.bf16.msra.mxu0 %v1957
    %2019 = vmatpush.bf16.msra.mxu0 %v1956
    %2020 = vmatpush.bf16.msra.mxu0 %v1955
    %2021 = vmatpush.bf16.msra.mxu0 %v1954
    %2022 = vmatpush.bf16.msra.mxu0 %v1953
    %2023 = vmatpush.bf16.msra.mxu0 %v1952
    %2024 = vmatmul.bf16.gmra.mxu0 %v1752
    %v2025 = vpop.f32.mrf.mxu0
    %v2026 = vadd.f32 %v1822, %v2025
    %v2027 = vpop.f32.mrf.mxu0
    %2028 = vdwg.mxu0
    %2029 = vmatpush.bf16.msra.mxu0 %v1967
    %2030 = vmatpush.bf16.msra.mxu0 %v1966
    %2031 = vmatpush.bf16.msra.mxu0 %v1965
    %2032 = vmatpush.bf16.msra.mxu0 %v1964
    %2033 = vmatpush.bf16.msra.mxu0 %v1963
    %2034 = vmatpush.bf16.msra.mxu0 %v1962
    %2035 = vmatpush.bf16.msra.mxu0 %v1961
    %2036 = vmatpush.bf16.msra.mxu0 %v1960
    %2037 = vmatmul.bf16.gmra.mxu0 %v1753
    %v2038 = vpop.f32.mrf.mxu0
    %v2039 = vadd.f32 %v2026, %v2038
    %v2040 = vpop.f32.mrf.mxu0
    %2041 = vdwg.mxu0
    %2042 = vmatpush.bf16.msra.mxu0 %v1975
    %2043 = vmatpush.bf16.msra.mxu0 %v1974
    %2044 = vmatpush.bf16.msra.mxu0 %v1973
    %2045 = vmatpush.bf16.msra.mxu0 %v1972
    %2046 = vmatpush.bf16.msra.mxu0 %v1971
    %2047 = vmatpush.bf16.msra.mxu0 %v1970
    %2048 = vmatpush.bf16.msra.mxu0 %v1969
    %2049 = vmatpush.bf16.msra.mxu0 %v1968
    %2050 = vmatmul.bf16.gmra.mxu0 %v1754
    %v2051 = vpop.f32.mrf.mxu0
    %v2052 = vadd.f32 %v2039, %v2051
    %v2053 = vpop.f32.mrf.mxu0
    %2054 = vdwg.mxu0
    %2055 = vmatpush.bf16.msra.mxu0 %v1983
    %2056 = vmatpush.bf16.msra.mxu0 %v1982
    %2057 = vmatpush.bf16.msra.mxu0 %v1981
    %2058 = vmatpush.bf16.msra.mxu0 %v1980
    %2059 = vmatpush.bf16.msra.mxu0 %v1979
    %2060 = vmatpush.bf16.msra.mxu0 %v1978
    %2061 = vmatpush.bf16.msra.mxu0 %v1977
    %2062 = vmatpush.bf16.msra.mxu0 %v1976
    %2063 = vmatmul.bf16.gmra.mxu0 %v1755
    %v2064 = vpop.f32.mrf.mxu0
    %v2065 = vadd.f32 %v2052, %v2064
    %v2066 = vpop.f32.mrf.mxu0
    %2067 = vdwg.mxu0
    %2068 = vst [vmem:[#allocation14] sm:$0xff] %v2065
    // Predicated region
    $region78: #{tpu_custom_call.1} parent=1 // pred_check
      _
    $region79: #{tpu_custom_call.1} parent=1 // pred_check_branch
      %2070 = sbr.rel (0) target = $region81
    $region80: #{tpu_custom_call.1} parent=1 // pred_region
      %2072 = vsyncadd [#allocation4], 0
      %s2074 = sshll.u32 [#allocation14], 4
      %s2075 = int_to_ptr.vmem [resolvable:$true] %s2074
      %s2076 = sshll.u32 %s12, 4
      %s2077 = int_to_ptr.hbm [resolvable:$true] %s2076
      %2079 = dma.vmem_to_hbm [thread:$0]  %s2075, 128, %s2077, [#allocation4]
    $region81: #{tpu_custom_call.1} parent=1 // pred_fallthru
      _
    // Predicated region
    $region82: #{tpu_custom_call.1} parent=1 // pred_check
      _
    $region83: #{tpu_custom_call.1} parent=1 // pred_check_branch
      %2081 = sbr.rel (0) target = $region85
    $region84: #{tpu_custom_call.1} parent=1 // pred_region
      %2083 = dma.done [#allocation4], 128
    $region85: #{tpu_custom_call.1} parent=1 // pred_fallthru
      _
    %2084 = vsyncpa [#allocation3], 1
    %2085 = vsyncpa [#allocation6], 1
    %2086 = vsyncpa [#allocation9], 1
    %2087 = vsyncpa [#allocation12], 1
    %2088 = vsyncpa [#allocation4], 1

</llo_original>
